<compile_context>
chip_gen: v7x
topology: tpu7x:2x2x1
jax: 0.10.0
libtpu: 0.0.40
codegen_flags: <defaults>
</compile_context>

<pallas_src>
import functools

import jax
import jax.numpy as jnp
from jax.experimental import pallas as pl
from jax.experimental.pallas import tpu as pltpu


def round_up(x, m):
    return (x + m - 1) // m * m


def cdiv(a, b):
    return -(-a // b)


def pad_to(x, shape, value=0.0):
    pads = [(0, t - s) for s, t in zip(x.shape, shape)]
    if all(p[1] == 0 for p in pads):
        return x
    return jnp.pad(x, pads, constant_values=value)


def _pick_vmem_limit():
    """Per-generation scoped-VMEM budget (v7x: 48 MiB, v5e/v6e: 96 MiB)."""
    try:
        cap = int(pltpu.get_tpu_info().vmem_capacity_bytes)
    except Exception:
        cap = 64 * 1024 * 1024
    return int(min(max(cap * 3 // 4, 48 * 1024 * 1024), 96 * 1024 * 1024))


_VMEM_LIMIT = _pick_vmem_limit()


# --------------------------------------------------------------------------
# Fused K-split matmul kernel (1x1 convs, im2col fallbacks, resize)
# --------------------------------------------------------------------------
def _matmul_kernel(*refs, taps, relu, has_add):
    a_refs = refs[:taps]
    b_ref, s_ref, t_ref = refs[taps], refs[taps + 1], refs[taps + 2]
    nxt = taps + 3
    add_ref = refs[nxt] if has_add else None
    if has_add:
        nxt += 1
    o_ref, acc_ref = refs[nxt], refs[nxt + 1]

    @pl.when(pl.program_id(2) == 0)
    def _():
        acc_ref[...] = jnp.zeros_like(acc_ref)

    # Chain tap dots in groups of 3 -> fewer accumulator read-modify-writes.
    for g in range(0, taps, 3):
        part = None
        for t in range(g, min(g + 3, taps)):
            dt = jnp.dot(a_refs[t][...], b_ref[t],
                         preferred_element_type=jnp.float32)
            part = dt if part is None else part + dt
        acc_ref[...] += part

    @pl.when(pl.program_id(2) == pl.num_programs(2) - 1)
    def _():
        y = acc_ref[...] * s_ref[...] + t_ref[...]
        if has_add:
            y = y + add_ref[...].astype(jnp.float32)
        if relu:
            y = jnp.maximum(y, 0.0)
        o_ref[...] = y.astype(o_ref.dtype)


def matmul_fused(a_list, b, scale, shift, relu=False, add=None,
                 out_dtype=jnp.bfloat16):
    """out = maybe_relu((sum_t a_t @ b[t]) * scale + shift [+ add]).

    a_list: list of (M, K) arrays (cast to bf16); b: (taps, K, N) bf16
    weights; scale/shift: (N,) f32; add (optional): (M, N) epilogue addend.
    """
    taps = len(a_list)
    M, K = a_list[0].shape
    tb, Kb, N = b.shape
    assert tb == taps and Kb == K

    tm_cap = 512 if taps > 1 else 1024          # multi-tap path: v7x budget
    tm = min(tm_cap, round_up(M, 8))
    bn = min(512, round_up(N, 128))
    bk = min(512, round_up(K, 128))
    Mp, Kp, Np = round_up(M, tm), round_up(K, bk), round_up(N, bn)
    # v7x megacore: try to keep >=2 blocks across the parallel axes.
    if Mp // tm == 1 and Np // bn == 1 and M > 256:
        tm = round_up(cdiv(M, 2), 8)
        Mp = round_up(M, tm)

    a_ps = [pad_to(a.astype(jnp.bfloat16), (Mp, Kp)) for a in a_list]
    b_p = pad_to(b.astype(jnp.bfloat16), (taps, Kp, Np))
    s_p = pad_to(scale.astype(jnp.float32).reshape(1, N), (1, Np))
    t_p = pad_to(shift.astype(jnp.float32).reshape(1, N), (1, Np))

    inputs = a_ps + [b_p, s_p, t_p]
    in_specs = ([pl.BlockSpec((tm, bk), lambda i, j, k: (i, k))
                 for _ in range(taps)]
                + [pl.BlockSpec((taps, bk, bn), lambda i, j, k: (0, k, j)),
                   pl.BlockSpec((1, bn), lambda i, j, k: (0, j)),
                   pl.BlockSpec((1, bn), lambda i, j, k: (0, j))])
    if add is not None:
        inputs.append(pad_to(add, (Mp, Np)))
        in_specs.append(pl.BlockSpec((tm, bn), lambda i, j, k: (i, j)))

    grid = (Mp // tm, Np // bn, Kp // bk)
    out = pl.pallas_call(
        functools.partial(_matmul_kernel, taps=taps, relu=relu,
                          has_add=add is not None),
        out_shape=jax.ShapeDtypeStruct((Mp, Np), out_dtype),
        grid_spec=pltpu.PrefetchScalarGridSpec(
            num_scalar_prefetch=0,
            grid=grid,
            in_specs=in_specs,
            out_specs=pl.BlockSpec((tm, bn), lambda i, j, k: (i, j)),
            scratch_shapes=[pltpu.VMEM((tm, bn), jnp.float32)]),
        compiler_params=pltpu.CompilerParams(
            dimension_semantics=("parallel", "parallel", "arbitrary"),
            vmem_limit_bytes=_VMEM_LIMIT),
    )(*inputs)
    return out[:M, :N]


# --------------------------------------------------------------------------
# Halo-tiled 3x3 stride-1 conv kernel (no per-tap HBM copies)
# --------------------------------------------------------------------------
def _halo_conv_kernel(x_hbm, w_ref, s_ref, t_ref, o_ref, x_vmem, sem, acc_ref,
                      *, offs, m_blk, halo, bk, n_k, nbuf, h_blocks, ha_wa,
                      relu):
    m = pl.program_id(0)
    k = pl.program_id(2)
    length = m_blk + halo
    q0 = (m // h_blocks) * ha_wa + (m % h_blocks) * m_blk

    def _copy(kk, slot):
        return pltpu.make_async_copy(
            x_hbm.at[pl.ds(q0, length), pl.ds(kk * bk, bk)],
            x_vmem.at[slot], sem.at[slot])

    @pl.when(k == 0)
    def _():
        _copy(0, 0).start()
        acc_ref[...] = jnp.zeros_like(acc_ref)

    if n_k > 1:
        @pl.when(k + 1 < n_k)
        def _():
            _copy(k + 1, (k + 1) % nbuf).start()

    slot = (k % nbuf) if nbuf > 1 else 0
    _copy(k, slot).wait()
    slab = x_vmem.at[slot]

    ntap = len(offs)
    for g in range(0, ntap, 3):
        part = None
        for t in range(g, min(g + 3, ntap)):
            a = slab[pl.ds(offs[t], m_blk), :]
            dt = jnp.dot(a, w_ref[t], preferred_element_type=jnp.float32)
            part = dt if part is None else part + dt
        acc_ref[...] += part

    @pl.when(k == n_k - 1)
    def _():
        y = acc_ref[...] * s_ref[...] + t_ref[...]
        if relu:
            y = jnp.maximum(y, 0.0)
        o_ref[...] = y.astype(o_ref.dtype)


def conv2d_halo(x, w, scale, shift, dilation, relu, out_dtype=jnp.bfloat16):
    """3x3 stride-1 'same' conv via flattened halo tiles.

    The zero-padded NHWC input is flattened per sample to
    (H_alloc*W_alloc, Cin); one halo'd row-slab per grid step is DMA'd into
    VMEM (double-buffered over the Cin axis) and the 9 taps are static
    in-VMEM offsets of that slab.  Outputs at junk (right-pad) columns are
    computed and discarded; valid positions equal the exact convolution.
    """
    N, H, W, Cin = x.shape
    kh, kw, _, Cout = w.shape
    d = dilation

    W_alloc = round_up(W + 2 * d, 8)
    Cin_p = round_up(Cin, 128)
    bk = min(512, Cin_p)
    Cin_p = round_up(Cin_p, bk)
    if Cin_p // bk < 2 and Cin_p >= 256 and (Cin_p // 2) % 128 == 0:
        bk = Cin_p // 2          # force >=2 K steps -> A-slab DMA overlaps
    n_k = Cin_p // bk
    nbuf = 2 if n_k > 1 else 1

    Cout_p = round_up(Cout, 128)
    bn = min(512, Cout_p)
    Cout_p = round_up(Cout_p, bn)

    halo = 2 * d * W_alloc + 2 * d
    th = max(1, min(H, max(1, 1024 // W_alloc)))
    while th > 1 and nbuf * (th * W_alloc + halo) * bk * 2 > 12 * 1024 * 1024:
        th -= 1
    h_blocks = cdiv(H, th)
    Hr = h_blocks * th
    m_blk = th * W_alloc
    H_alloc = Hr + 2 * d + 1
    ha_wa = H_alloc * W_alloc

    x_p = jnp.pad(x.astype(jnp.bfloat16),
                  ((0, 0), (d, H_alloc - H - d), (d, W_alloc - W - d),
                   (0, Cin_p - Cin)))
    x_flat = x_p.reshape(N * ha_wa, Cin_p)

    w_p = pad_to(w.astype(jnp.bfloat16).reshape(kh * kw, Cin, Cout),
                 (kh * kw, Cin_p, Cout_p))
    s_p = pad_to(scale.astype(jnp.float32).reshape(1, Cout), (1, Cout_p))
    t_p = pad_to(shift.astype(jnp.float32).reshape(1, Cout), (1, Cout_p))

    offs = tuple(i * d * W_alloc + j * d for i in range(kh) for j in range(kw))

    grid = (N * h_blocks, Cout_p // bn, n_k)
    out = pl.pallas_call(
        functools.partial(_halo_conv_kernel, offs=offs, m_blk=m_blk,
                          halo=halo, bk=bk, n_k=n_k, nbuf=nbuf,
                          h_blocks=h_blocks, ha_wa=ha_wa, relu=relu),
        out_shape=jax.ShapeDtypeStruct((N * h_blocks * m_blk, Cout_p),
                                       out_dtype),
        grid_spec=pltpu.PrefetchScalarGridSpec(
            num_scalar_prefetch=0,
            grid=grid,
            in_specs=[pl.BlockSpec(memory_space=pl.ANY),
                      pl.BlockSpec((kh * kw, bk, bn),
                                   lambda m, j, k: (0, k, j)),
                      pl.BlockSpec((1, bn), lambda m, j, k: (0, j)),
                      pl.BlockSpec((1, bn), lambda m, j, k: (0, j))],
            out_specs=pl.BlockSpec((m_blk, bn), lambda m, j, k: (m, j)),
            scratch_shapes=[pltpu.VMEM((nbuf, m_blk + halo, bk),
                                       jnp.bfloat16),
                            pltpu.SemaphoreType.DMA((nbuf,)),
                            pltpu.VMEM((m_blk, bn), jnp.float32)]),
        compiler_params=pltpu.CompilerParams(
            dimension_semantics=("parallel", "parallel", "arbitrary"),
            vmem_limit_bytes=_VMEM_LIMIT),
    )(x_flat, w_p, s_p, t_p)

    out = out.reshape(N, Hr, W_alloc, Cout_p)[:, :H, :W, :Cout]
    return out


# --------------------------------------------------------------------------
# Other elementwise / pooling kernels
# --------------------------------------------------------------------------
def _max_kernel(*refs):
    o_ref = refs[-1]
    acc = refs[0][...]
    for r in refs[1:-1]:
        acc = jnp.maximum(acc, r[...])
    o_ref[...] = acc


def _gap_kernel(x_ref, o_ref, acc_ref, *, inv_hw):
    @pl.when(pl.program_id(0) == 0)
    def _():
        acc_ref[...] = jnp.zeros_like(acc_ref)

    acc_ref[...] += jnp.sum(x_ref[...].astype(jnp.float32), axis=1,
                            keepdims=True)

    @pl.when(pl.program_id(0) == pl.num_programs(0) - 1)
    def _():
        o_ref[...] = (acc_ref[...] * inv_hw).astype(o_ref.dtype)


# --------------------------------------------------------------------------
# Conv / pooling / resize glue (slicing/padding in JAX, compute in Pallas)
# --------------------------------------------------------------------------
def extract_tap_slices(x, kh, kw, stride, dilation, padding):
    """Per-tap im2col slices.  x: (N,H,W,C) -> list of kh*kw (N*OH*OW, C)."""
    N, H, W, C = x.shape
    xp = jnp.pad(x, ((0, 0), (padding, padding), (padding, padding), (0, 0)))
    OH = (H + 2 * padding - dilation * (kh - 1) - 1) // stride + 1
    OW = (W + 2 * padding - dilation * (kw - 1) - 1) // stride + 1
    slices = []
    for i in range(kh):
        for j in range(kw):
            s = xp[:, i * dilation: i * dilation + (OH - 1) * stride + 1: stride,
                      j * dilation: j * dilation + (OW - 1) * stride + 1: stride, :]
            slices.append(s.reshape(N * OH * OW, C))
    return slices, OH, OW


def conv2d(x, w, scale, shift, stride=1, dilation=1, padding=0, relu=True,
           add=None, out_dtype=jnp.bfloat16):
    """Conv + folded-BN/bias (+ ReLU / + fused residual add).  x: NHWC."""
    kh, kw, cin, cout = w.shape
    N, H, W, _ = x.shape
    if kh == 1 and kw == 1 and padding == 0 and dilation == 1:
        xs = x[:, ::stride, ::stride, :] if stride > 1 else x
        OH, OW = xs.shape[1], xs.shape[2]
        a_list = [xs.reshape(N * OH * OW, cin)]
        b = w.reshape(1, cin, cout)
        add2 = add.reshape(N * OH * OW, cout) if add is not None else None
        y = matmul_fused(a_list, b, scale, shift, relu=relu, add=add2,
                         out_dtype=out_dtype)
        return y.reshape(N, OH, OW, cout)

    assert add is None, "fused residual add only supported on the 1x1 path"
    if (kh == 3 and kw == 3 and stride == 1 and padding == dilation
            and (H + 2 * dilation) * (W + 2 * dilation) <= 4 * H * W):
        # Halo-tiled conv: input read ~once (+halo) instead of 9 tap copies.
        return conv2d_halo(x, w, scale, shift, dilation, relu, out_dtype)

    if cin >= 128:
        # Tap-split fallback (stride-2 3x3 and very-large-dilation ASPP).
        a_list, OH, OW = extract_tap_slices(x, kh, kw, stride, dilation,
                                            padding)
        b = w.reshape(kh * kw, cin, cout)
    else:
        # Small-Cin path (7x7 stem): concatenated im2col.
        slices, OH, OW = extract_tap_slices(x, kh, kw, stride, dilation,
                                            padding)
        a_list = [jnp.concatenate(slices, axis=-1)]
        b = w.reshape(1, kh * kw * cin, cout)
    y = matmul_fused(a_list, b, scale, shift, relu=relu, out_dtype=out_dtype)
    return y.reshape(N, OH, OW, cout)


def maxpool2d(x, ksize=3, stride=2, padding=1):
    N, H, W, C = x.shape
    xp = jnp.pad(x, ((0, 0), (padding, padding), (padding, padding), (0, 0)),
                 constant_values=-jnp.inf)
    OH = (H + 2 * padding - ksize) // stride + 1
    OW = (W + 2 * padding - ksize) // stride + 1
    M = N * OH * OW
    taps = []
    for i in range(ksize):
        for j in range(ksize):
            taps.append(xp[:, i: i + (OH - 1) * stride + 1: stride,
                              j: j + (OW - 1) * stride + 1: stride, :]
                        .reshape(M, C))
    # Lane-densify: fold spatial pairs into the 128-lane axis when C < 128.
    if C < 128 and 128 % C == 0 and M % (128 // C) == 0:
        f = 128 // C
        taps = [t.reshape(M // f, C * f) for t in taps]
        Mm, Cc = M // f, C * f
    else:
        Mm, Cc = M, C
    tm = min(1024, round_up(Mm, 8))
    Cp = round_up(Cc, 128)
    Mp = round_up(Mm, tm)
    taps_p = [pad_to(t, (Mp, Cp)) for t in taps]
    nt = len(taps_p)
    out = pl.pallas_call(
        _max_kernel,
        out_shape=jax.ShapeDtypeStruct((Mp, Cp), x.dtype),
        grid=(Mp // tm,),
        in_specs=[pl.BlockSpec((tm, Cp), lambda i: (i, 0)) for _ in range(nt)],
        out_specs=pl.BlockSpec((tm, Cp), lambda i: (i, 0)),
        compiler_params=pltpu.CompilerParams(
            dimension_semantics=("parallel",)),
    )(*taps_p)
    return out[:Mm, :Cc].reshape(N, OH, OW, C)


def global_avg_pool(x):
    """AdaptiveAvgPool2d(1).  x: (N,H,W,C) -> (N,1,1,C)."""
    N, H, W, C = x.shape
    HW = H * W
    thw = min(1024, round_up(HW, 8))
    Cp = round_up(C, 128)
    HWp = round_up(HW, thw)
    xr = pad_to(x.reshape(N, HW, C), (N, HWp, Cp))
    out = pl.pallas_call(
        functools.partial(_gap_kernel, inv_hw=1.0 / float(HW)),
        out_shape=jax.ShapeDtypeStruct((N, 1, Cp), x.dtype),
        grid=(HWp // thw,),
        in_specs=[pl.BlockSpec((N, thw, Cp), lambda i: (0, i, 0))],
        out_specs=pl.BlockSpec((N, 1, Cp), lambda i: (0, 0, 0)),
        scratch_shapes=[pltpu.VMEM((N, 1, Cp), jnp.float32)],
        compiler_params=pltpu.CompilerParams(
            dimension_semantics=("arbitrary",)),
    )(xr)
    return out[:, :, :C].reshape(N, 1, 1, C)


def resize_matrix(out_size, in_size):
    """Row-stochastic bilinear matrix, PyTorch align_corners=False semantics."""
    d = jnp.arange(out_size, dtype=jnp.float32)
    src = (d + 0.5) * (float(in_size) / float(out_size)) - 0.5
    src = jnp.clip(src, 0.0, float(in_size) - 1.0)
    i0 = jnp.minimum(jnp.floor(src).astype(jnp.int32), in_size - 1)
    i1 = jnp.minimum(i0 + 1, in_size - 1)
    lam = src - i0.astype(jnp.float32)
    rows = jnp.arange(out_size)
    A = jnp.zeros((out_size, in_size), jnp.float32)
    A = A.at[rows, i0].add(1.0 - lam)
    A = A.at[rows, i1].add(lam)
    return A


def bilinear_resize(x, OH, OW, out_dtype=jnp.float32):
    """F.interpolate(mode='bilinear', align_corners=False).  x: NHWC."""
    N, H, W, C = x.shape
    if (OH, OW) == (H, W):
        return x.astype(out_dtype)
    Ah = resize_matrix(OH, H)
    Aw = resize_matrix(OW, W)
    ones = lambda n: jnp.ones((n,), jnp.float32)
    zeros = lambda n: jnp.zeros((n,), jnp.float32)
    # resize along W
    t = jnp.transpose(x, (0, 1, 3, 2)).reshape(N * H * C, W)
    t = matmul_fused([t], Aw.T.reshape(1, W, OW), ones(OW), zeros(OW),
                     relu=False, out_dtype=jnp.float32)
    t = t.reshape(N, H, C, OW)
    # resize along H
    t = jnp.transpose(t, (0, 3, 2, 1)).reshape(N * OW * C, H)
    t = matmul_fused([t], Ah.T.reshape(1, H, OH), ones(OH), zeros(OH),
                     relu=False, out_dtype=jnp.float32)
    t = t.reshape(N, OW, C, OH)
    return jnp.transpose(t, (0, 3, 1, 2)).astype(out_dtype)


# --------------------------------------------------------------------------
# Parameter construction (deterministic, synthetic; weights stored in bf16)
# --------------------------------------------------------------------------
class KeyGen:
    def __init__(self, seed=0):
        self.key = jax.random.PRNGKey(seed)

    def __call__(self):
        self.key, sub = jax.random.split(self.key)
        return sub


def make_conv_bn(kg, kh, kw, cin, cout, eps=1e-5):
    fan_in = kh * kw * cin
    w = jax.random.normal(kg(), (kh, kw, cin, cout), jnp.float32) * jnp.sqrt(2.0 / fan_in)
    gamma = 1.0 + 0.1 * jax.random.normal(kg(), (cout,), jnp.float32)
    beta = 0.05 * jax.random.normal(kg(), (cout,), jnp.float32)
    mean = 0.05 * jax.random.normal(kg(), (cout,), jnp.float32)
    var = 1.0 + 0.1 * jax.random.uniform(kg(), (cout,), jnp.float32)
    scale = gamma / jnp.sqrt(var + eps)
    shift = beta - mean * scale
    return {"w": w.astype(jnp.bfloat16), "scale": scale, "shift": shift}


def conv_bn(x, p, stride=1, dilation=1, padding=0, relu=True, add=None,
            out_dtype=jnp.bfloat16):
    return conv2d(x, p["w"], p["scale"], p["shift"], stride, dilation,
                  padding, relu, add, out_dtype)


def make_bottleneck(kg, inplanes, planes, stride, dilation, downsample):
    return {
        "conv1": make_conv_bn(kg, 1, 1, inplanes, planes),
        "conv2": make_conv_bn(kg, 3, 3, planes, planes),
        "conv3": make_conv_bn(kg, 1, 1, planes, planes * 4),
        "downsample": make_conv_bn(kg, 1, 1, inplanes, planes * 4) if downsample else None,
        "stride": stride,
        "dilation": dilation,
    }


def bottleneck_forward(x, p):
    out = conv_bn(x, p["conv1"], 1, 1, 0, relu=True)
    out = conv_bn(out, p["conv2"], p["stride"], p["dilation"], p["dilation"],
                  relu=True)
    if p["downsample"] is not None:
        identity = conv_bn(x, p["downsample"], p["stride"], 1, 0, relu=False)
    else:
        identity = x
    # conv3 + BN + residual add + ReLU fused into one matmul epilogue.
    return conv_bn(out, p["conv3"], 1, 1, 0, relu=True, add=identity)


def make_layer(kg, inplanes, planes, blocks, stride, dilate, dilation):
    previous_dilation = dilation
    if dilate:
        dilation *= stride
        stride = 1
    downsample = (stride != 1) or (inplanes != planes * 4)
    layers = [make_bottleneck(kg, inplanes, planes, stride, previous_dilation, downsample)]
    inplanes = planes * 4
    for _ in range(1, blocks):
        layers.append(make_bottleneck(kg, inplanes, planes, 1, dilation, False))
    return layers, inplanes, dilation


def make_backbone(kg):
    p = {"conv1": make_conv_bn(kg, 7, 7, 3, 64)}
    inplanes, dilation = 64, 1
    # replace_stride_with_dilation = [False, True, True]
    p["layer1"], inplanes, dilation = make_layer(kg, inplanes, 64, 3, 1, False, dilation)
    p["layer2"], inplanes, dilation = make_layer(kg, inplanes, 128, 4, 2, False, dilation)
    p["layer3"], inplanes, dilation = make_layer(kg, inplanes, 256, 6, 2, True, dilation)
    p["layer4"], inplanes, dilation = make_layer(kg, inplanes, 512, 3, 2, True, dilation)
    return p


def backbone_forward(x, p):
    x = conv_bn(x, p["conv1"], stride=2, dilation=1, padding=3, relu=True)
    x = maxpool2d(x, 3, 2, 1)
    for name in ("layer1", "layer2", "layer3", "layer4"):
        for blk in p[name]:
            x = bottleneck_forward(x, blk)
    return x


def make_aspp(kg, in_ch=2048, out_ch=256, rates=(12, 24, 36)):
    return {
        "b0": make_conv_bn(kg, 1, 1, in_ch, out_ch),
        "b1": make_conv_bn(kg, 3, 3, in_ch, out_ch),
        "b2": make_conv_bn(kg, 3, 3, in_ch, out_ch),
        "b3": make_conv_bn(kg, 3, 3, in_ch, out_ch),
        "pool": make_conv_bn(kg, 1, 1, in_ch, out_ch),
        "project": make_conv_bn(kg, 1, 1, 5 * out_ch, out_ch),
        "rates": rates,
        "out_ch": out_ch,
    }


def aspp_forward(x, p):
    N, H, W, _ = x.shape
    out_ch = p["out_ch"]
    res = [conv_bn(x, p["b0"], 1, 1, 0, relu=True)]
    for i, r in enumerate(p["rates"]):
        res.append(conv_bn(x, p["b%d" % (i + 1)], 1, r, r, relu=True))
    g = global_avg_pool(x)
    g = conv_bn(g, p["pool"], 1, 1, 0, relu=True)        # (N,1,1,256)

    pj = p["project"]
    wf = pj["w"].reshape(5, out_ch, out_ch)
    # Global-pool branch folded into a per-sample post-scale bias of the
    # projection instead of a broadcast 5th K-split stream.
    pool_bias = matmul_fused([g.reshape(N, out_ch)], wf[4:5], pj["scale"],
                             jnp.zeros((out_ch,), jnp.float32), relu=False,
                             out_dtype=jnp.float32)       # (N, out_ch)
    add = jnp.broadcast_to(pool_bias[:, None, :], (N, H * W, out_ch))
    M = N * H * W
    a_list = [r.reshape(M, out_ch) for r in res]          # 4 branch taps
    y = matmul_fused(a_list, wf[:4], pj["scale"], pj["shift"], relu=True,
                     add=add.reshape(M, out_ch), out_dtype=jnp.bfloat16)
    # Dropout(0.5): eval-mode identity.
    return y.reshape(N, H, W, out_ch)


def make_head(kg, num_classes=2):
    p = {"aspp": make_aspp(kg), "conv": make_conv_bn(kg, 3, 3, 256, 256)}
    fan_in = 256
    p["final_w"] = (jax.random.normal(kg(), (1, 1, 256, num_classes), jnp.float32)
                    * jnp.sqrt(2.0 / fan_in)).astype(jnp.bfloat16)
    p["final_b"] = 0.01 * jax.random.normal(kg(), (num_classes,), jnp.float32)
    return p


def head_forward(x, p):
    x = aspp_forward(x, p["aspp"])
    x = conv_bn(x, p["conv"], 1, 1, 1, relu=True)
    nc = p["final_w"].shape[-1]
    return conv2d(x, p["final_w"], jnp.ones((nc,), jnp.float32), p["final_b"],
                  1, 1, 0, relu=False, out_dtype=jnp.float32)


def make_handseg_params(seed=0):
    kg = KeyGen(seed)
    return {"backbone": make_backbone(kg), "head": make_head(kg, num_classes=2)}


def handseg_forward(x_nchw, params):
    """HandSegModel.forward: y = deeplabv3_resnet50(x)['out'].  In/out are NCHW."""
    x = jnp.transpose(x_nchw, (0, 2, 3, 1)).astype(jnp.bfloat16)  # NCHW -> NHWC
    N, H, W, _ = x.shape
    feat = backbone_forward(x, params["backbone"])
    logits = head_forward(feat, params["head"])            # f32 logits
    out = bilinear_resize(logits, H, W, out_dtype=jnp.float32)
    return jnp.transpose(out, (0, 3, 1, 2))                 # NHWC -> NCHW


# --------------------------------------------------------------------------
if __name__ == "__main__":
    # Small deterministic example (PyTorch reference used 2x3x400x225; we use
    # a small spatial size consistent with the 3-channel NCHW input contract).
    key = jax.random.PRNGKey(0)
    x = jax.random.uniform(key, (2, 3, 32, 32), jnp.float32)

    params = make_handseg_params(seed=0)
    y = handseg_forward(x, params)
    y = jax.block_until_ready(y)

    assert y.shape == (2, 2, 32, 32), y.shape
    assert bool(jnp.all(jnp.isfinite(y)))
    print("KERNEL_OK")
</pallas_src>

<mosaic_0001>
module attributes {stable_mosaic.version = 11 : i64} {
  func.func @_matmul_kernel(%arg0: i32, %arg1: i32, %arg2: i32, %arg3: memref<256x256xbf16, #tpu.memory_space<vmem>>, %arg4: memref<1x256x128xbf16, #tpu.memory_space<vmem>>, %arg5: memref<1x128xf32, #tpu.memory_space<vmem>>, %arg6: memref<1x128xf32, #tpu.memory_space<vmem>>, %arg7: memref<256x128xbf16, #tpu.memory_space<vmem>>, %arg8: memref<256x128xf32, #tpu.memory_space<vmem>>) attributes {dimension_semantics = [#tpu.dimension_semantics<parallel>, #tpu.dimension_semantics<parallel>, #tpu.dimension_semantics<arbitrary>], iteration_bounds = array<i64: 2, 1, 1>, scalar_prefetch = 0 : i64, scratch_operands = 1 : i64, tpu.core_type = #tpu.core_type<tc>, window_params = [{transform_indices = @transform_0, window_bounds = array<i64: 256, 256>}, {transform_indices = @transform_1, window_bounds = array<i64: 1, 256, 128>}, {transform_indices = @transform_2, window_bounds = array<i64: 1, 128>}, {transform_indices = @transform_3, window_bounds = array<i64: 1, 128>}, {transform_indices = @transform_4, window_bounds = array<i64: 256, 128>}]} {
    %c0_i32 = arith.constant 0 : i32
    %0 = arith.cmpi eq, %arg2, %c0_i32 : i32
    %1 = arith.extui %0 : i1 to i32
    %c0_i32_0 = arith.constant 0 : i32
    %2 = arith.cmpi ne, %1, %c0_i32_0 : i32
    scf.if %2 {
      %cst_11 = arith.constant 0.000000e+00 : f32
      %13 = vector.broadcast %cst_11 : f32 to vector<256x128xf32>
      %c0_12 = arith.constant 0 : index
      %c0_13 = arith.constant 0 : index
      %14 = vector.load %arg8[%c0_12, %c0_13] : memref<256x128xf32, #tpu.memory_space<vmem>>, vector<256x128xf32>
      tpu.vector_store %arg8[%c0_12, %c0_13], %13 {strides = array<i32>} : memref<256x128xf32, #tpu.memory_space<vmem>>, vector<256x128xf32>,
    } else {
    }
    %c0 = arith.constant 0 : index
    %c0_1 = arith.constant 0 : index
    %3 = vector.load %arg3[%c0, %c0_1] : memref<256x256xbf16, #tpu.memory_space<vmem>>, vector<256x256xbf16>
    %c0_2 = arith.constant 0 : index
    %c0_3 = arith.constant 0 : index
    %c0_4 = arith.constant 0 : index
    %4 = vector.load %arg4[%c0_2, %c0_3, %c0_4] : memref<1x256x128xbf16, #tpu.memory_space<vmem>>, vector<1x256x128xbf16>
    %5 = vector.shape_cast %4 : vector<1x256x128xbf16> to vector<256x128xbf16>
    %cst = arith.constant dense<0.000000e+00> : vector<256x128xf32>
    %6 = tpu.matmul %3, %5, %cst {dimension_numbers = #tpu.dot_dimension_numbers<[1], [0], [0], [1], [0, 0, 1, 1], [], []>} : vector<256x256xbf16>, vector<256x128xbf16>, vector<256x128xf32> -> vector<256x128xf32>
    %c0_5 = arith.constant 0 : index
    %c0_6 = arith.constant 0 : index
    %7 = vector.load %arg8[%c0_5, %c0_6] : memref<256x128xf32, #tpu.memory_space<vmem>>, vector<256x128xf32>
    %8 = arith.addf %7, %6 : vector<256x128xf32>
    %c0_7 = arith.constant 0 : index
    %c0_8 = arith.constant 0 : index
    %9 = vector.load %arg8[%c0_7, %c0_8] : memref<256x128xf32, #tpu.memory_space<vmem>>, vector<256x128xf32>
    tpu.vector_store %arg8[%c0_7, %c0_8], %8 {strides = array<i32>} : memref<256x128xf32, #tpu.memory_space<vmem>>, vector<256x128xf32>,
    %c0_i32_9 = arith.constant 0 : i32
    %10 = arith.cmpi eq, %arg2, %c0_i32_9 : i32
    %11 = arith.extui %10 : i1 to i32
    %c0_i32_10 = arith.constant 0 : i32
    %12 = arith.cmpi ne, %11, %c0_i32_10 : i32
    scf.if %12 {
      %c0_11 = arith.constant 0 : index
      %c0_12 = arith.constant 0 : index
      %13 = vector.load %arg8[%c0_11, %c0_12] : memref<256x128xf32, #tpu.memory_space<vmem>>, vector<256x128xf32>
      %c0_13 = arith.constant 0 : index
      %c0_14 = arith.constant 0 : index
      %14 = vector.load %arg5[%c0_13, %c0_14] : memref<1x128xf32, #tpu.memory_space<vmem>>, vector<1x128xf32>
      %15 = vector.broadcast %14 : vector<1x128xf32> to vector<256x128xf32>
      %16 = arith.mulf %13, %15 : vector<256x128xf32>
      %c0_15 = arith.constant 0 : index
      %c0_16 = arith.constant 0 : index
      %17 = vector.load %arg6[%c0_15, %c0_16] : memref<1x128xf32, #tpu.memory_space<vmem>>, vector<1x128xf32>
      %18 = vector.broadcast %17 : vector<1x128xf32> to vector<256x128xf32>
      %19 = arith.addf %16, %18 : vector<256x128xf32>
      %cst_17 = arith.constant 0.000000e+00 : f32
      %20 = vector.broadcast %cst_17 : f32 to vector<256x128xf32>
      %21 = arith.maximumf %19, %20 : vector<256x128xf32>
      %22 = arith.truncf %21 : vector<256x128xf32> to vector<256x128xbf16>
      %c0_18 = arith.constant 0 : index
      %c0_19 = arith.constant 0 : index
      %23 = vector.load %arg7[%c0_18, %c0_19] : memref<256x128xbf16, #tpu.memory_space<vmem>>, vector<256x128xbf16>
      tpu.vector_store %arg7[%c0_18, %c0_19], %22 {strides = array<i32>} : memref<256x128xbf16, #tpu.memory_space<vmem>>, vector<256x128xbf16>,
    } else {
    }
    return
  }
  func.func @transform_0(%arg0: i32, %arg1: i32, %arg2: i32) -> (i32, i32) {
    %c0_i32 = arith.constant 0 : i32
    return %arg0, %arg2 : i32, i32
  }
  func.func @transform_1(%arg0: i32, %arg1: i32, %arg2: i32) -> (i32, i32, i32) {
    %c0_i32 = arith.constant 0 : i32
    %c0_i32_0 = arith.constant 0 : i32
    return %c0_i32, %arg2, %arg1 : i32, i32, i32
  }
  func.func @transform_2(%arg0: i32, %arg1: i32, %arg2: i32) -> (i32, i32) {
    %c0_i32 = arith.constant 0 : i32
    %c0_i32_0 = arith.constant 0 : i32
    return %c0_i32, %arg1 : i32, i32
  }
  func.func @transform_3(%arg0: i32, %arg1: i32, %arg2: i32) -> (i32, i32) {
    %c0_i32 = arith.constant 0 : i32
    %c0_i32_0 = arith.constant 0 : i32
    return %c0_i32, %arg1 : i32, i32
  }
  func.func @transform_4(%arg0: i32, %arg1: i32, %arg2: i32) -> (i32, i32) {
    %c0_i32 = arith.constant 0 : i32
    return %arg0, %arg1 : i32, i32
  }
}

</mosaic_0001>

<llo_original>
// kernel: tpu_custom_call.1
$region0: #{tpu_custom_call.1}
  #allocation0 [shape = 'u32[]', space=smem, size = 0x4, offset = 0x4, fixed_abs, tag = 'smem constant byte address 0x4 - core index']
  #allocation1 [shape = 'u32[144,128]{1,0:T(1,128)}', space=vmem, size = 0x12000, scoped, tag = 'internal scratch']
  #allocation2 [shape = 'f32[256,128]{1,0:T(8,128)}', space=vmem, size = 0x20000, scoped, tag = 'scratch operand']
  %s0 = inlined_call_operand.hbm [shape: bf16[512,256], index: 0, kind: input, shape index: {}]
  %s1 = inlined_call_operand.hbm [shape: bf16[1,256,128], index: 1, kind: input, shape index: {}]
  %s2 = inlined_call_operand.vmem [shape: f32[1,128], index: 2, kind: input, shape index: {}]
  %s3 = inlined_call_operand.vmem [shape: f32[1,128], index: 3, kind: input, shape index: {}]
  %s4 = inlined_call_operand.hbm [shape: bf16[512,128], index: 4, kind: output, shape index: {}]
  %s5 = sld [smem:[#allocation0]]
  $region65: #{tpu_custom_call.1} parent=0
    _
  %s7 = ssub.s32 1, %s5
  %s8 = scalar_select 0, %s7, %s5
  $region1: #{tpu_custom_call.1} parent=0
    #allocation3 [shape = 'u8[262144]{0}', space=vmem, size = 0x40000, scoped, tag = 'input window, operand 0']
    #allocation4 [shape = 's32[2]{0}', space=sflag, size = 0x8, scoped, tag = 'scoped memory for tpu_custom_call.1']
    #allocation5 [shape = 's32[2]{0}', space=sflag, size = 0x8, scoped, tag = 'scoped memory for tpu_custom_call.1']
    #allocation6 [shape = 'u8[65536]{0}', space=vmem, size = 0x10000, scoped, tag = 'input window, operand 1, single buffered']
    #allocation7 [shape = 's32[1]{0}', space=sflag, size = 0x4, scoped, tag = 'scoped memory for tpu_custom_call.1']
    #allocation8 [shape = 'u8[131072]{0}', space=vmem, size = 0x20000, scoped, tag = 'output window, operand 0']
    %9 = vsyncpa [#allocation4], 0
    %s10 = scalar_lea.sflag [#allocation4], 1
    %11 = vsyncpa %s10, 0
    %12 = vsyncpa [#allocation7], 0
    %13 = vsyncpa [#allocation5], 0
    %s14 = scalar_lea.sflag [#allocation5], 1
    %15 = vsyncpa %s14, 0
    loop: start=0, step=1, limit=4
    $region2: #{tpu_custom_call.1} parent=1 // loop_pre_header
      _
    $region3: #{tpu_custom_call.1} parent=1 // loop_header
      %s17 = sphi 0, %s21
      %p18 = scmp.ge.s32.totalorder %s17, 4
      %s24 = sphi 0, %s43
      %s25 = sphi 0, %s39
      %s26 = sphi 0, %s35
      %s27 = sphi 0, %s24
      %s28 = sphi 0, %s25
      %s29 = sphi 0, %s26
      %s30 = sphi 0, %s27
      %s31 = sphi 0, %s28
      %s32 = sphi 0, %s29
      %s48 = sphi 0, %s50
      %s51 = sphi 0, %s48
      %s52 = sphi 0, %s51
      %s68 = sphi 0, %s52
      %s76 = sphi 0, %s78
      %s79 = sphi 0, %s76
      %s80 = sphi 0, %s79
      %s96 = sphi 0, %s80
      %s102 = sphi 0, %s104
      %s105 = sphi 0, %s102
      %s106 = sphi 0, %s105
      %s122 = sphi 0, %s106
      %s128 = sphi 0, %s130
      %s131 = sphi 0, %s128
      %s132 = sphi 0, %s131
      %s148 = sphi 0, %s132
      %s156 = sphi 0, %s158
      %s159 = sphi 0, %s156
      %s160 = sphi 0, %s159
      %s176 = sphi 0, %s160
    $region4: #{tpu_custom_call.1} parent=1 // loop_header_branch
      %20 = sbr.rel (%p18) target = $region8
    $region5: #{tpu_custom_call.1} parent=1 // loop_body
      %s22 = ssub.s32 %s17, 1
      %s23 = ssub.s32 %s17, 2
      %s33 = sadd.s32 1, %s26
      %p34 = scmp.ge.s32.totalorder %s33, 1
      %s35 = scalar_select %p34, 0, %s33
      %s36 = sadd.s32 1, %s25
      %s37 = scalar_select %p34, %s36, %s25
      %p38 = scmp.ge.s32.totalorder %s37, 1
      %s39 = scalar_select %p38, 0, %s37
      %s40 = sadd.s32 1, %s24
      %s41 = scalar_select %p38, %s40, %s24
      %p42 = scmp.ge.s32.totalorder %s41, 2
      %s43 = scalar_select %p42, 0, %s41
      %s44 = ssub.s32 %s24, %s43
      %s45 = ssub.s32 %s26, %s35
      %s46 = sor.u32 %s44, %s45
      %p47 = scmp.eq.s32.totalorder %s46, 0
      %s49 = sadd.s32 %s48, 1
      %s50 = scalar_select %p47, %s48, %s49
      %p53 = pneg %p47
      %p54 = scmp.eq.s32.totalorder %s17, 1
      %p55 = por %p53, %p54
      %p56 = scmp.ne.s32.totalorder %s48, %s51
      %p57 = scmp.eq.s32.totalorder %s17, 0
      %p58 = por %p56, %p57
      %p59 = scmp.ne.s32.totalorder %s48, %s51
      %p60 = scmp.eq.s32.totalorder %s22, 1
      %p61 = por %p59, %p60
      %p62 = scmp.ne.s32.totalorder %s51, %s52
      %p63 = scmp.eq.s32.totalorder %s22, 0
      %p64 = por %p62, %p63
      %p65 = scmp.ne.s32.totalorder %s51, %s52
      %p66 = scmp.eq.s32.totalorder %s23, 1
      %p67 = por %p65, %p66
      %p69 = scmp.ne.s32.totalorder %s52, %s68
      %p70 = scmp.eq.s32.totalorder %s23, 0
      %p71 = por %p69, %p70
      %s72 = ssub.s32 %s26, %s35
      %s73 = ssub.s32 %s25, %s39
      %s74 = sor.u32 %s72, %s73
      %p75 = scmp.eq.s32.totalorder %s74, 0
      %s77 = sadd.s32 %s76, 1
      %s78 = scalar_select %p75, %s76, %s77
      %p81 = pneg %p75
      %p82 = scmp.eq.s32.totalorder %s17, 1
      %p83 = por %p81, %p82
      %p84 = scmp.ne.s32.totalorder %s76, %s79
      %p85 = scmp.eq.s32.totalorder %s17, 0
      %p86 = por %p84, %p85
      %p87 = scmp.ne.s32.totalorder %s76, %s79
      %p88 = scmp.eq.s32.totalorder %s22, 1
      %p89 = por %p87, %p88
      %p90 = scmp.ne.s32.totalorder %s79, %s80
      %p91 = scmp.eq.s32.totalorder %s22, 0
      %p92 = por %p90, %p91
      %p93 = scmp.ne.s32.totalorder %s79, %s80
      %p94 = scmp.eq.s32.totalorder %s23, 1
      %p95 = por %p93, %p94
      %p97 = scmp.ne.s32.totalorder %s80, %s96
      %p98 = scmp.eq.s32.totalorder %s23, 0
      %p99 = por %p97, %p98
      %s100 = ssub.s32 %s25, %s39
      %p101 = scmp.eq.s32.totalorder %s100, 0
      %s103 = sadd.s32 %s102, 1
      %s104 = scalar_select %p101, %s102, %s103
      %p107 = pneg %p101
      %p108 = scmp.eq.s32.totalorder %s17, 1
      %p109 = por %p107, %p108
      %p110 = scmp.ne.s32.totalorder %s102, %s105
      %p111 = scmp.eq.s32.totalorder %s17, 0
      %p112 = por %p110, %p111
      %p113 = scmp.ne.s32.totalorder %s102, %s105
      %p114 = scmp.eq.s32.totalorder %s22, 1
      %p115 = por %p113, %p114
      %p116 = scmp.ne.s32.totalorder %s105, %s106
      %p117 = scmp.eq.s32.totalorder %s22, 0
      %p118 = por %p116, %p117
      %p119 = scmp.ne.s32.totalorder %s105, %s106
      %p120 = scmp.eq.s32.totalorder %s23, 1
      %p121 = por %p119, %p120
      %p123 = scmp.ne.s32.totalorder %s106, %s122
      %p124 = scmp.eq.s32.totalorder %s23, 0
      %p125 = por %p123, %p124
      %s126 = ssub.s32 %s25, %s39
      %p127 = scmp.eq.s32.totalorder %s126, 0
      %s129 = sadd.s32 %s128, 1
      %s130 = scalar_select %p127, %s128, %s129
      %p133 = pneg %p127
      %p134 = scmp.eq.s32.totalorder %s17, 1
      %p135 = por %p133, %p134
      %p136 = scmp.ne.s32.totalorder %s128, %s131
      %p137 = scmp.eq.s32.totalorder %s17, 0
      %p138 = por %p136, %p137
      %p139 = scmp.ne.s32.totalorder %s128, %s131
      %p140 = scmp.eq.s32.totalorder %s22, 1
      %p141 = por %p139, %p140
      %p142 = scmp.ne.s32.totalorder %s131, %s132
      %p143 = scmp.eq.s32.totalorder %s22, 0
      %p144 = por %p142, %p143
      %p145 = scmp.ne.s32.totalorder %s131, %s132
      %p146 = scmp.eq.s32.totalorder %s23, 1
      %p147 = por %p145, %p146
      %p149 = scmp.ne.s32.totalorder %s132, %s148
      %p150 = scmp.eq.s32.totalorder %s23, 0
      %p151 = por %p149, %p150
      %s152 = ssub.s32 %s24, %s43
      %s153 = ssub.s32 %s25, %s39
      %s154 = sor.u32 %s152, %s153
      %p155 = scmp.eq.s32.totalorder %s154, 0
      %s157 = sadd.s32 %s156, 1
      %s158 = scalar_select %p155, %s156, %s157
      %p161 = pneg %p155
      %p162 = scmp.eq.s32.totalorder %s17, 1
      %p163 = por %p161, %p162
      %p164 = scmp.ne.s32.totalorder %s156, %s159
      %p165 = scmp.eq.s32.totalorder %s17, 0
      %p166 = por %p164, %p165
      %p167 = scmp.ne.s32.totalorder %s156, %s159
      %p168 = scmp.eq.s32.totalorder %s22, 1
      %p169 = por %p167, %p168
      %p170 = scmp.ne.s32.totalorder %s159, %s160
      %p171 = scmp.eq.s32.totalorder %s22, 0
      %p172 = por %p170, %p171
      %p173 = scmp.ne.s32.totalorder %s159, %s160
      %p174 = scmp.eq.s32.totalorder %s23, 1
      %p175 = por %p173, %p174
      %p177 = scmp.ne.s32.totalorder %s160, %s176
      %p178 = scmp.eq.s32.totalorder %s23, 0
      %p179 = por %p177, %p178
      %p180 = scmp.le.s32.totalorder 1, %s17
      %p181 = scmp.lt.s32.totalorder %s17, 3
      %p182 = pnand %p180, %p181
      %p183 = pneg %p182
      // Predicated region
      $region9: #{tpu_custom_call.1} parent=5 // pred_check
        _
      $region10: #{tpu_custom_call.1} parent=5 // pred_check_branch
        %185 = sbr.rel (%p182) target = $region12
      $region11: #{tpu_custom_call.1} parent=5 // pred_region
        %s186 = ssub.s32 %s17, 1
        // Predicated region
        $region13: #{tpu_custom_call.1} parent=11 // pred_check
          %p187 = pneg %p92
        $region14: #{tpu_custom_call.1} parent=11 // pred_check_branch
          %189 = sbr.rel (%p187) target = $region16
        $region15: #{tpu_custom_call.1} parent=11 // pred_region
          %s190 = smul.u32 32, %s29
          %s192 = ssub.s32 2048, 2048
          %193 = vsyncadd [#allocation7], %s192
          %s194 = sadd.s32 %s28, %s190
          %s195 = smul.addr %s194, 64
          %s196 = scalar_lea.hbm %s1, %s195
          %s197 = sshll.u32 [#allocation6], 4
          %s198 = int_to_ptr.vmem [resolvable:$true] %s197
          %203 = dma.hbm_to_vmem [thread:$0]  %s196, 2048, %s198, [#allocation7], 64, 64, 4
        $region16: #{tpu_custom_call.1} parent=11 // pred_fallthru
          _
        // Predicated region
        $region17: #{tpu_custom_call.1} parent=11 // pred_check
          %p204 = pneg %p118
        $region18: #{tpu_custom_call.1} parent=11 // pred_check_branch
          %206 = sbr.rel (%p204) target = $region20
        $region19: #{tpu_custom_call.1} parent=11 // pred_region
          %p207 = scmp.lt.s32.totalorder %s28, 0
          %s208 = scalar_select %p207, %s28, 0
          %s209 = scalar_lea.vmem %s2, %s208
        $region20: #{tpu_custom_call.1} parent=11 // pred_fallthru
          _
        // Predicated region
        $region21: #{tpu_custom_call.1} parent=11 // pred_check
          %p210 = pneg %p144
        $region22: #{tpu_custom_call.1} parent=11 // pred_check_branch
          %212 = sbr.rel (%p210) target = $region24
        $region23: #{tpu_custom_call.1} parent=11 // pred_region
          %p213 = scmp.lt.s32.totalorder %s28, 0
          %s214 = scalar_select %p213, %s28, 0
          %s215 = scalar_lea.vmem %s3, %s214
        $region24: #{tpu_custom_call.1} parent=11 // pred_fallthru
          _
      $region12: #{tpu_custom_call.1} parent=5 // pred_fallthru
        _
      %p216 = scmp.lt.s32.totalorder %s17, 2
      // Predicated region
      $region25: #{tpu_custom_call.1} parent=5 // pred_check
        %p217 = pneg %p216
      $region26: #{tpu_custom_call.1} parent=5 // pred_check_branch
        %219 = sbr.rel (%p217) target = $region28
      $region27: #{tpu_custom_call.1} parent=5 // pred_region
        // Predicated region
        $region29: #{tpu_custom_call.1} parent=27 // pred_check
          %p220 = pneg %p58
        $region30: #{tpu_custom_call.1} parent=27 // pred_check_branch
          %222 = sbr.rel (%p220) target = $region32
        $region31: #{tpu_custom_call.1} parent=27 // pred_region
          %s223 = sand.u32 %s48, 1
          %s224 = scalar_lea.sflag [#allocation4], %s223
          %s225 = sand.u32 %s48, 1
          %s226 = smul.addr %s225, 256
          %s227 = scalar_lea.vmem [#allocation3], %s226
          %s228 = smul.u32 32, %s24
          %s229 = smul.u32 2, %s26
          %s231 = ssub.s32 4096, 4096
          %232 = vsyncadd %s224, %s231
          %s233 = smul.addr %s228, 2
          %s234 = sadd.s32 %s229, %s233
          %s235 = smul.addr %s234, 64
          %s236 = scalar_lea.hbm %s0, %s235
          %s237 = sshll.u32 %s227, 4
          %s238 = int_to_ptr.vmem [resolvable:$true] %s237
          %243 = dma.hbm_to_vmem [thread:$0]  %s236, 4096, %s238, %s224, 128, 128, 8
        $region32: #{tpu_custom_call.1} parent=27 // pred_fallthru
          _
      $region28: #{tpu_custom_call.1} parent=5 // pred_fallthru
        _
      %p244 = scmp.le.s32.totalorder 1, %s17
      %p245 = scmp.lt.s32.totalorder %s17, 3
      %p246 = pnand %p244, %p245
      %p247 = pneg %p246
      // Predicated region
      $region33: #{tpu_custom_call.1} parent=5 // pred_check
        _
      $region34: #{tpu_custom_call.1} parent=5 // pred_check_branch
        %249 = sbr.rel (%p246) target = $region36
      $region35: #{tpu_custom_call.1} parent=5 // pred_region
        %s250 = ssub.s32 %s17, 1
        %s251 = sand.u32 %s51, 1
        %s252 = scalar_lea.sflag [#allocation4], %s251
        %s253 = sand.u32 %s51, 1
        %s254 = smul.addr %s253, 256
        %s255 = scalar_lea.vmem [#allocation3], %s254
        // Predicated region
        $region37: #{tpu_custom_call.1} parent=35 // pred_check
          %p256 = pneg %p64
        $region38: #{tpu_custom_call.1} parent=35 // pred_check_branch
          %258 = sbr.rel (%p256) target = $region40
        $region39: #{tpu_custom_call.1} parent=35 // pred_region
          %259 = dma.done %s252, 4096
        $region40: #{tpu_custom_call.1} parent=35 // pred_fallthru
          _
        // Predicated region
        $region41: #{tpu_custom_call.1} parent=35 // pred_check
          %p260 = pneg %p92
        $region42: #{tpu_custom_call.1} parent=35 // pred_check_branch
          %262 = sbr.rel (%p260) target = $region44
        $region43: #{tpu_custom_call.1} parent=35 // pred_region
          %263 = dma.done [#allocation7], 2048
        $region44: #{tpu_custom_call.1} parent=35 // pred_fallthru
          _
        %s264 = sand.u32 %s51, 1
        %s265 = scalar_lea.sflag [#allocation4], %s264
        %s266 = sand.u32 %s51, 1
        %s267 = smul.addr %s266, 256
        %s268 = scalar_lea.vmem [#allocation3], %s267
        %p269 = pneg %p64
        %p270 = pneg %p61
        %p271 = pneg %p92
        %p272 = pneg %p89
        %p273 = scmp.lt.s32.totalorder %s28, 0
        %s274 = scalar_select %p273, %s28, 0
        %s275 = scalar_lea.vmem %s2, %s274
        %p276 = pneg %p118
        %p277 = pneg %p115
        %p278 = scmp.lt.s32.totalorder %s28, 0
        %s279 = scalar_select %p278, %s28, 0
        %s280 = scalar_lea.vmem %s3, %s279
        %p281 = pneg %p144
        %p282 = pneg %p141
        %p283 = pneg %p172
        %p284 = pneg %p169
        %s285 = sand.u32 %s159, 1
        %s286 = scalar_lea.sflag [#allocation5], %s285
        %s287 = sand.u32 %s159, 1
        %s288 = smul.addr %s287, 128
        %s289 = scalar_lea.vmem [#allocation8], %s288
        %s290 = smul.u32 32, %s27
        %s291 = smul.u32 2, %s29
        %s292 = smul.u32 32, %s29
        %p293 = scmp.lt.s32.totalorder %s28, 0
        %s294 = scalar_select %p293, %s28, 0
        %s295 = scalar_lea.vmem %s2, %s294
        %p296 = scmp.lt.s32.totalorder %s28, 0
        %s297 = scalar_select %p296, %s28, 0
        %s298 = scalar_lea.vmem %s3, %s297
        %s299 = smul.u32 32, %s27
        %p301 = scmp.eq.s32.totalorder %s29, 0
        // Predicated region
        $region45: #{tpu_custom_call.1} parent=35 // pred_check
          %p302 = pneg %p301
        $region46: #{tpu_custom_call.1} parent=35 // pred_check_branch
          %304 = sbr.rel (%p302) target = $region48
        $region47: #{tpu_custom_call.1} parent=35 // pred_region
          %305 = vst [vmem:[#allocation2] sm:$0xff] 0.0
          %306 = vst [vmem:[#allocation2 + $0x8] sm:$0xff] 0.0
          %307 = vst [vmem:[#allocation2 + $0x10] sm:$0xff] 0.0
          %308 = vst [vmem:[#allocation2 + $0x18] sm:$0xff] 0.0
          %309 = vst [vmem:[#allocation2 + $0x20] sm:$0xff] 0.0
          %310 = vst [vmem:[#allocation2 + $0x28] sm:$0xff] 0.0
          %311 = vst [vmem:[#allocation2 + $0x30] sm:$0xff] 0.0
          %312 = vst [vmem:[#allocation2 + $0x38] sm:$0xff] 0.0
          %313 = vst [vmem:[#allocation2 + $0x40] sm:$0xff] 0.0
          %314 = vst [vmem:[#allocation2 + $0x48] sm:$0xff] 0.0
          %315 = vst [vmem:[#allocation2 + $0x50] sm:$0xff] 0.0
          %316 = vst [vmem:[#allocation2 + $0x58] sm:$0xff] 0.0
          %317 = vst [vmem:[#allocation2 + $0x60] sm:$0xff] 0.0
          %318 = vst [vmem:[#allocation2 + $0x68] sm:$0xff] 0.0
          %319 = vst [vmem:[#allocation2 + $0x70] sm:$0xff] 0.0
          %320 = vst [vmem:[#allocation2 + $0x78] sm:$0xff] 0.0
          %321 = vst [vmem:[#allocation2 + $0x80] sm:$0xff] 0.0
          %322 = vst [vmem:[#allocation2 + $0x88] sm:$0xff] 0.0
          %323 = vst [vmem:[#allocation2 + $0x90] sm:$0xff] 0.0
          %324 = vst [vmem:[#allocation2 + $0x98] sm:$0xff] 0.0
          %325 = vst [vmem:[#allocation2 + $0xa0] sm:$0xff] 0.0
          %326 = vst [vmem:[#allocation2 + $0xa8] sm:$0xff] 0.0
          %327 = vst [vmem:[#allocation2 + $0xb0] sm:$0xff] 0.0
          %328 = vst [vmem:[#allocation2 + $0xb8] sm:$0xff] 0.0
          %329 = vst [vmem:[#allocation2 + $0xc0] sm:$0xff] 0.0
          %330 = vst [vmem:[#allocation2 + $0xc8] sm:$0xff] 0.0
          %331 = vst [vmem:[#allocation2 + $0xd0] sm:$0xff] 0.0
          %332 = vst [vmem:[#allocation2 + $0xd8] sm:$0xff] 0.0
          %333 = vst [vmem:[#allocation2 + $0xe0] sm:$0xff] 0.0
          %334 = vst [vmem:[#allocation2 + $0xe8] sm:$0xff] 0.0
          %335 = vst [vmem:[#allocation2 + $0xf0] sm:$0xff] 0.0
          %336 = vst [vmem:[#allocation2 + $0xf8] sm:$0xff] 0.0
        $region48: #{tpu_custom_call.1} parent=35 // pred_fallthru
          _
        %v337 = vld [vmem:[%s255] sm:$0xff]
        %v338 = vld [vmem:[%s255 + $0x8] sm:$0xff]
        %v339 = vld [vmem:[%s255 + $0x10] sm:$0xff]
        %v340 = vld [vmem:[%s255 + $0x18] sm:$0xff]
        %v341 = vld [vmem:[%s255 + $0x20] sm:$0xff]
        %v342 = vld [vmem:[%s255 + $0x28] sm:$0xff]
        %v343 = vld [vmem:[%s255 + $0x30] sm:$0xff]
        %v344 = vld [vmem:[%s255 + $0x38] sm:$0xff]
        %v345 = vld [vmem:[%s255 + $0x40] sm:$0xff]
        %v346 = vld [vmem:[%s255 + $0x48] sm:$0xff]
        %v347 = vld [vmem:[%s255 + $0x50] sm:$0xff]
        %v348 = vld [vmem:[%s255 + $0x58] sm:$0xff]
        %v349 = vld [vmem:[%s255 + $0x60] sm:$0xff]
        %v350 = vld [vmem:[%s255 + $0x68] sm:$0xff]
        %v351 = vld [vmem:[%s255 + $0x70] sm:$0xff]
        %v352 = vld [vmem:[%s255 + $0x78] sm:$0xff]
        %v353 = vld [vmem:[%s255 + $0x80] sm:$0xff]
        %v354 = vld [vmem:[%s255 + $0x88] sm:$0xff]
        %v355 = vld [vmem:[%s255 + $0x90] sm:$0xff]
        %v356 = vld [vmem:[%s255 + $0x98] sm:$0xff]
        %v357 = vld [vmem:[%s255 + $0xa0] sm:$0xff]
        %v358 = vld [vmem:[%s255 + $0xa8] sm:$0xff]
        %v359 = vld [vmem:[%s255 + $0xb0] sm:$0xff]
        %v360 = vld [vmem:[%s255 + $0xb8] sm:$0xff]
        %v361 = vld [vmem:[%s255 + $0xc0] sm:$0xff]
        %v362 = vld [vmem:[%s255 + $0xc8] sm:$0xff]
        %v363 = vld [vmem:[%s255 + $0xd0] sm:$0xff]
        %v364 = vld [vmem:[%s255 + $0xd8] sm:$0xff]
        %v365 = vld [vmem:[%s255 + $0xe0] sm:$0xff]
        %v366 = vld [vmem:[%s255 + $0xe8] sm:$0xff]
        %v367 = vld [vmem:[%s255 + $0xf0] sm:$0xff]
        %v368 = vld [vmem:[%s255 + $0xf8] sm:$0xff]
        %v369 = vld [vmem:[#allocation6] sm:$0xf]
        %v370 = vld [vmem:[#allocation6 + $0x4] sm:$0xf]
        %v371 = vld [vmem:[#allocation6 + $0x8] sm:$0xf]
        %v372 = vld [vmem:[#allocation6 + $0xc] sm:$0xf]
        %v373 = vld [vmem:[#allocation6 + $0x10] sm:$0xf]
        %v374 = vld [vmem:[#allocation6 + $0x14] sm:$0xf]
        %v375 = vld [vmem:[#allocation6 + $0x18] sm:$0xf]
        %v376 = vld [vmem:[#allocation6 + $0x1c] sm:$0xf]
        %v377 = vld [vmem:[#allocation6 + $0x20] sm:$0xf]
        %v378 = vld [vmem:[#allocation6 + $0x24] sm:$0xf]
        %v379 = vld [vmem:[#allocation6 + $0x28] sm:$0xf]
        %v380 = vld [vmem:[#allocation6 + $0x2c] sm:$0xf]
        %v381 = vld [vmem:[#allocation6 + $0x30] sm:$0xf]
        %v382 = vld [vmem:[#allocation6 + $0x34] sm:$0xf]
        %v383 = vld [vmem:[#allocation6 + $0x38] sm:$0xf]
        %v384 = vld [vmem:[#allocation6 + $0x3c] sm:$0xf]
        %v385 = vld [vmem:[#allocation6 + $0x40] sm:$0xf]
        %v386 = vld [vmem:[#allocation6 + $0x44] sm:$0xf]
        %v387 = vld [vmem:[#allocation6 + $0x48] sm:$0xf]
        %v388 = vld [vmem:[#allocation6 + $0x4c] sm:$0xf]
        %v389 = vld [vmem:[#allocation6 + $0x50] sm:$0xf]
        %v390 = vld [vmem:[#allocation6 + $0x54] sm:$0xf]
        %v391 = vld [vmem:[#allocation6 + $0x58] sm:$0xf]
        %v392 = vld [vmem:[#allocation6 + $0x5c] sm:$0xf]
        %v393 = vld [vmem:[#allocation6 + $0x60] sm:$0xf]
        %v394 = vld [vmem:[#allocation6 + $0x64] sm:$0xf]
        %v395 = vld [vmem:[#allocation6 + $0x68] sm:$0xf]
        %v396 = vld [vmem:[#allocation6 + $0x6c] sm:$0xf]
        %v397 = vld [vmem:[#allocation6 + $0x70] sm:$0xf]
        %v398 = vld [vmem:[#allocation6 + $0x74] sm:$0xf]
        %v399 = vld [vmem:[#allocation6 + $0x78] sm:$0xf]
        %v400 = vld [vmem:[#allocation6 + $0x7c] sm:$0xf]
        %v433 = vunpack.c.l.b16 %v337
        %v434 = vunpack.c.h.b16 %v337
        %v435 = vunpack.c.l.b16 %v338
        %v436 = vunpack.c.h.b16 %v338
        %v437 = vunpack.c.l.b16 %v339
        %v438 = vunpack.c.h.b16 %v339
        %v439 = vunpack.c.l.b16 %v340
        %v440 = vunpack.c.h.b16 %v340
        %v441 = vunpack.c.l.b16 %v341
        %v442 = vunpack.c.h.b16 %v341
        %v443 = vunpack.c.l.b16 %v342
        %v444 = vunpack.c.h.b16 %v342
        %v445 = vunpack.c.l.b16 %v343
        %v446 = vunpack.c.h.b16 %v343
        %v447 = vunpack.c.l.b16 %v344
        %v448 = vunpack.c.h.b16 %v344
        %v449 = vunpack.c.l.b16 %v345
        %v450 = vunpack.c.h.b16 %v345
        %v451 = vunpack.c.l.b16 %v346
        %v452 = vunpack.c.h.b16 %v346
        %v453 = vunpack.c.l.b16 %v347
        %v454 = vunpack.c.h.b16 %v347
        %v455 = vunpack.c.l.b16 %v348
        %v456 = vunpack.c.h.b16 %v348
        %v457 = vunpack.c.l.b16 %v349
        %v458 = vunpack.c.h.b16 %v349
        %v459 = vunpack.c.l.b16 %v350
        %v460 = vunpack.c.h.b16 %v350
        %v461 = vunpack.c.l.b16 %v351
        %v462 = vunpack.c.h.b16 %v351
        %v463 = vunpack.c.l.b16 %v352
        %v464 = vunpack.c.h.b16 %v352
        %v465 = vunpack.c.l.b16 %v353
        %v466 = vunpack.c.h.b16 %v353
        %v467 = vunpack.c.l.b16 %v354
        %v468 = vunpack.c.h.b16 %v354
        %v469 = vunpack.c.l.b16 %v355
        %v470 = vunpack.c.h.b16 %v355
        %v471 = vunpack.c.l.b16 %v356
        %v472 = vunpack.c.h.b16 %v356
        %v473 = vunpack.c.l.b16 %v357
        %v474 = vunpack.c.h.b16 %v357
        %v475 = vunpack.c.l.b16 %v358
        %v476 = vunpack.c.h.b16 %v358
        %v477 = vunpack.c.l.b16 %v359
        %v478 = vunpack.c.h.b16 %v359
        %v479 = vunpack.c.l.b16 %v360
        %v480 = vunpack.c.h.b16 %v360
        %v481 = vunpack.c.l.b16 %v361
        %v482 = vunpack.c.h.b16 %v361
        %v483 = vunpack.c.l.b16 %v362
        %v484 = vunpack.c.h.b16 %v362
        %v485 = vunpack.c.l.b16 %v363
        %v486 = vunpack.c.h.b16 %v363
        %v487 = vunpack.c.l.b16 %v364
        %v488 = vunpack.c.h.b16 %v364
        %v489 = vunpack.c.l.b16 %v365
        %v490 = vunpack.c.h.b16 %v365
        %v491 = vunpack.c.l.b16 %v366
        %v492 = vunpack.c.h.b16 %v366
        %v493 = vunpack.c.l.b16 %v367
        %v494 = vunpack.c.h.b16 %v367
        %v495 = vunpack.c.l.b16 %v368
        %v496 = vunpack.c.h.b16 %v368
        %v497 = vpack.c.b16 %v435, %v433
        %v498 = vpack.c.b16 %v436, %v434
        %v499 = vpack.c.b16 %v439, %v437
        %v500 = vpack.c.b16 %v440, %v438
        %v501 = vpack.c.b16 %v443, %v441
        %v502 = vpack.c.b16 %v444, %v442
        %v503 = vpack.c.b16 %v447, %v445
        %v504 = vpack.c.b16 %v448, %v446
        %v505 = vpack.c.b16 %v451, %v449
        %v506 = vpack.c.b16 %v452, %v450
        %v507 = vpack.c.b16 %v455, %v453
        %v508 = vpack.c.b16 %v456, %v454
        %v509 = vpack.c.b16 %v459, %v457
        %v510 = vpack.c.b16 %v460, %v458
        %v511 = vpack.c.b16 %v463, %v461
        %v512 = vpack.c.b16 %v464, %v462
        %v513 = vpack.c.b16 %v467, %v465
        %v514 = vpack.c.b16 %v468, %v466
        %v515 = vpack.c.b16 %v471, %v469
        %v516 = vpack.c.b16 %v472, %v470
        %v517 = vpack.c.b16 %v475, %v473
        %v518 = vpack.c.b16 %v476, %v474
        %v519 = vpack.c.b16 %v479, %v477
        %v520 = vpack.c.b16 %v480, %v478
        %v521 = vpack.c.b16 %v483, %v481
        %v522 = vpack.c.b16 %v484, %v482
        %v523 = vpack.c.b16 %v487, %v485
        %v524 = vpack.c.b16 %v488, %v486
        %v525 = vpack.c.b16 %v491, %v489
        %v526 = vpack.c.b16 %v492, %v490
        %v527 = vpack.c.b16 %v495, %v493
        %v528 = vpack.c.b16 %v496, %v494
        %v593 = vunpack.c.l.b16 %v369
        %v594 = vunpack.c.l.b16 %v370
        %v595 = vunpack.c.l.b16 %v371
        %v596 = vunpack.c.l.b16 %v372
        %v597 = vunpack.c.l.b16 %v373
        %v598 = vunpack.c.l.b16 %v374
        %v599 = vunpack.c.l.b16 %v375
        %v600 = vunpack.c.l.b16 %v376
        %v601 = vunpack.c.l.b16 %v377
        %v602 = vunpack.c.l.b16 %v378
        %v603 = vunpack.c.l.b16 %v379
        %v604 = vunpack.c.l.b16 %v380
        %v605 = vunpack.c.l.b16 %v381
        %v606 = vunpack.c.l.b16 %v382
        %v607 = vunpack.c.l.b16 %v383
        %v608 = vunpack.c.l.b16 %v384
        %v609 = vunpack.c.l.b16 %v385
        %v610 = vunpack.c.l.b16 %v386
        %v611 = vunpack.c.l.b16 %v387
        %v612 = vunpack.c.l.b16 %v388
        %v613 = vunpack.c.l.b16 %v389
        %v614 = vunpack.c.l.b16 %v390
        %v615 = vunpack.c.l.b16 %v391
        %v616 = vunpack.c.l.b16 %v392
        %v617 = vunpack.c.l.b16 %v393
        %v618 = vunpack.c.l.b16 %v394
        %v619 = vunpack.c.l.b16 %v395
        %v620 = vunpack.c.l.b16 %v396
        %v621 = vunpack.c.l.b16 %v397
        %v622 = vunpack.c.l.b16 %v398
        %v623 = vunpack.c.l.b16 %v399
        %v624 = vunpack.c.l.b16 %v400
        %v625 = vpack.c.b16 %v594, %v593
        %v626 = vpack.c.b16 %v596, %v595
        %v627 = vpack.c.b16 %v598, %v597
        %v628 = vpack.c.b16 %v600, %v599
        %v629 = vpack.c.b16 %v602, %v601
        %v630 = vpack.c.b16 %v604, %v603
        %v631 = vpack.c.b16 %v606, %v605
        %v632 = vpack.c.b16 %v608, %v607
        %v633 = vpack.c.b16 %v610, %v609
        %v634 = vpack.c.b16 %v612, %v611
        %v635 = vpack.c.b16 %v614, %v613
        %v636 = vpack.c.b16 %v616, %v615
        %v637 = vpack.c.b16 %v618, %v617
        %v638 = vpack.c.b16 %v620, %v619
        %v639 = vpack.c.b16 %v622, %v621
        %v640 = vpack.c.b16 %v624, %v623
        %657 = vmatprep.subr.bf16.mxu0 0
        %658 = vmatpush1.bf16.msra.mxu0 %v625
        %659 = vmatprep.subr.bf16.mxu0 0
        %660 = vmatpush1.bf16.msra.mxu0 %v626
        %661 = vmatprep.subr.bf16.mxu0 0
        %662 = vmatpush1.bf16.msra.mxu0 %v627
        %663 = vmatprep.subr.bf16.mxu0 0
        %664 = vmatpush1.bf16.msra.mxu0 %v628
        %665 = vmatprep.subr.bf16.mxu0 0
        %666 = vmatpush1.bf16.msra.mxu0 %v629
        %667 = vmatprep.subr.bf16.mxu0 0
        %668 = vmatpush1.bf16.msra.mxu0 %v630
        %669 = vmatprep.subr.bf16.mxu0 0
        %670 = vmatpush1.bf16.msra.mxu0 %v631
        %671 = vmatprep.subr.bf16.mxu0 0
        %672 = vmatpush1.bf16.msra.mxu0 %v632
        %673 = vmatprep.subr.bf16.mxu0 0
        %674 = vmatpush1.bf16.msra.mxu0 %v633
        %675 = vmatprep.subr.bf16.mxu0 0
        %676 = vmatpush1.bf16.msra.mxu0 %v634
        %677 = vmatprep.subr.bf16.mxu0 0
        %678 = vmatpush1.bf16.msra.mxu0 %v635
        %679 = vmatprep.subr.bf16.mxu0 0
        %680 = vmatpush1.bf16.msra.mxu0 %v636
        %681 = vmatprep.subr.bf16.mxu0 0
        %682 = vmatpush1.bf16.msra.mxu0 %v637
        %683 = vmatprep.subr.bf16.mxu0 0
        %684 = vmatpush1.bf16.msra.mxu0 %v638
        %685 = vmatprep.subr.bf16.mxu0 0
        %686 = vmatpush1.bf16.msra.mxu0 %v639
        %687 = vmatprep.subr.bf16.mxu0 0
        %688 = vmatpush1.bf16.msra.mxu0 %v640
        %689 = vmatprep.mubr.bf16.mxu0 %v498
        %690 = vmatmul.mubr.bf16.gmra.mrb[0].mxu0 %v497
        %v691 = vpop.f32.mrb[0].mxu0
        %v692 = vadd.f32 0.0, %v691
        %v693 = vpop.f32.mrb[0].mxu0
        %v694 = vpop.f32.mrb[0].mxu0
        %v695 = vadd.f32 0.0, %v694
        %v696 = vpop.f32.mrb[0].mxu0
        %697 = vmatprep.mubr.bf16.mxu0 %v500
        %698 = vmatmul.mubr.bf16.gmra.mrb[0].mxu0 %v499
        %v699 = vpop.f32.mrb[0].mxu0
        %v700 = vadd.f32 0.0, %v699
        %v701 = vpop.f32.mrb[0].mxu0
        %v702 = vpop.f32.mrb[0].mxu0
        %v703 = vadd.f32 0.0, %v702
        %v704 = vpop.f32.mrb[0].mxu0
        %705 = vmatprep.mubr.bf16.mxu0 %v502
        %706 = vmatmul.mubr.bf16.gmra.mrb[0].mxu0 %v501
        %v707 = vpop.f32.mrb[0].mxu0
        %v708 = vadd.f32 0.0, %v707
        %v709 = vpop.f32.mrb[0].mxu0
        %v710 = vpop.f32.mrb[0].mxu0
        %v711 = vadd.f32 0.0, %v710
        %v712 = vpop.f32.mrb[0].mxu0
        %713 = vmatprep.mubr.bf16.mxu0 %v504
        %714 = vmatmul.mubr.bf16.gmra.mrb[0].mxu0 %v503
        %v715 = vpop.f32.mrb[0].mxu0
        %v716 = vadd.f32 0.0, %v715
        %v717 = vpop.f32.mrb[0].mxu0
        %v718 = vpop.f32.mrb[0].mxu0
        %v719 = vadd.f32 0.0, %v718
        %v720 = vpop.f32.mrb[0].mxu0
        %721 = vmatprep.mubr.bf16.mxu0 %v506
        %722 = vmatmul.mubr.bf16.gmra.mrb[0].mxu0 %v505
        %v723 = vpop.f32.mrb[0].mxu0
        %v724 = vadd.f32 0.0, %v723
        %v725 = vpop.f32.mrb[0].mxu0
        %v726 = vpop.f32.mrb[0].mxu0
        %v727 = vadd.f32 0.0, %v726
        %v728 = vpop.f32.mrb[0].mxu0
        %729 = vmatprep.mubr.bf16.mxu0 %v508
        %730 = vmatmul.mubr.bf16.gmra.mrb[0].mxu0 %v507
        %v731 = vpop.f32.mrb[0].mxu0
        %v732 = vadd.f32 0.0, %v731
        %v733 = vpop.f32.mrb[0].mxu0
        %v734 = vpop.f32.mrb[0].mxu0
        %v735 = vadd.f32 0.0, %v734
        %v736 = vpop.f32.mrb[0].mxu0
        %737 = vmatprep.mubr.bf16.mxu0 %v510
        %738 = vmatmul.mubr.bf16.gmra.mrb[0].mxu0 %v509
        %v739 = vpop.f32.mrb[0].mxu0
        %v740 = vadd.f32 0.0, %v739
        %v741 = vpop.f32.mrb[0].mxu0
        %v742 = vpop.f32.mrb[0].mxu0
        %v743 = vadd.f32 0.0, %v742
        %v744 = vpop.f32.mrb[0].mxu0
        %745 = vmatprep.mubr.bf16.mxu0 %v512
        %746 = vmatmul.mubr.bf16.gmra.mrb[0].mxu0 %v511
        %v747 = vpop.f32.mrb[0].mxu0
        %v748 = vadd.f32 0.0, %v747
        %v749 = vpop.f32.mrb[0].mxu0
        %v750 = vpop.f32.mrb[0].mxu0
        %v751 = vadd.f32 0.0, %v750
        %v752 = vpop.f32.mrb[0].mxu0
        %753 = vmatprep.mubr.bf16.mxu0 %v514
        %754 = vmatmul.mubr.bf16.gmra.mrb[0].mxu0 %v513
        %v755 = vpop.f32.mrb[0].mxu0
        %v756 = vadd.f32 0.0, %v755
        %v757 = vpop.f32.mrb[0].mxu0
        %v758 = vpop.f32.mrb[0].mxu0
        %v759 = vadd.f32 0.0, %v758
        %v760 = vpop.f32.mrb[0].mxu0
        %761 = vmatprep.mubr.bf16.mxu0 %v516
        %762 = vmatmul.mubr.bf16.gmra.mrb[0].mxu0 %v515
        %v763 = vpop.f32.mrb[0].mxu0
        %v764 = vadd.f32 0.0, %v763
        %v765 = vpop.f32.mrb[0].mxu0
        %v766 = vpop.f32.mrb[0].mxu0
        %v767 = vadd.f32 0.0, %v766
        %v768 = vpop.f32.mrb[0].mxu0
        %769 = vmatprep.mubr.bf16.mxu0 %v518
        %770 = vmatmul.mubr.bf16.gmra.mrb[0].mxu0 %v517
        %v771 = vpop.f32.mrb[0].mxu0
        %v772 = vadd.f32 0.0, %v771
        %v773 = vpop.f32.mrb[0].mxu0
        %v774 = vpop.f32.mrb[0].mxu0
        %v775 = vadd.f32 0.0, %v774
        %v776 = vpop.f32.mrb[0].mxu0
        %777 = vmatprep.mubr.bf16.mxu0 %v520
        %778 = vmatmul.mubr.bf16.gmra.mrb[0].mxu0 %v519
        %v779 = vpop.f32.mrb[0].mxu0
        %v780 = vadd.f32 0.0, %v779
        %v781 = vpop.f32.mrb[0].mxu0
        %v782 = vpop.f32.mrb[0].mxu0
        %v783 = vadd.f32 0.0, %v782
        %v784 = vpop.f32.mrb[0].mxu0
        %785 = vmatprep.mubr.bf16.mxu0 %v522
        %786 = vmatmul.mubr.bf16.gmra.mrb[0].mxu0 %v521
        %v787 = vpop.f32.mrb[0].mxu0
        %v788 = vadd.f32 0.0, %v787
        %v789 = vpop.f32.mrb[0].mxu0
        %v790 = vpop.f32.mrb[0].mxu0
        %v791 = vadd.f32 0.0, %v790
        %v792 = vpop.f32.mrb[0].mxu0
        %793 = vmatprep.mubr.bf16.mxu0 %v524
        %794 = vmatmul.mubr.bf16.gmra.mrb[0].mxu0 %v523
        %v795 = vpop.f32.mrb[0].mxu0
        %v796 = vadd.f32 0.0, %v795
        %v797 = vpop.f32.mrb[0].mxu0
        %v798 = vpop.f32.mrb[0].mxu0
        %v799 = vadd.f32 0.0, %v798
        %v800 = vpop.f32.mrb[0].mxu0
        %801 = vmatprep.mubr.bf16.mxu0 %v526
        %802 = vmatmul.mubr.bf16.gmra.mrb[0].mxu0 %v525
        %v803 = vpop.f32.mrb[0].mxu0
        %v804 = vadd.f32 0.0, %v803
        %v805 = vpop.f32.mrb[0].mxu0
        %v806 = vpop.f32.mrb[0].mxu0
        %v807 = vadd.f32 0.0, %v806
        %v808 = vpop.f32.mrb[0].mxu0
        %809 = vmatprep.mubr.bf16.mxu0 %v528
        %810 = vmatmul.mubr.bf16.gmra.mrb[0].mxu0 %v527
        %v811 = vpop.f32.mrb[0].mxu0
        %v812 = vadd.f32 0.0, %v811
        %v813 = vpop.f32.mrb[0].mxu0
        %v814 = vpop.f32.mrb[0].mxu0
        %v815 = vadd.f32 0.0, %v814
        %v816 = vpop.f32.mrb[0].mxu0
        %817 = vdwg.mxu0
        %v818 = vld [vmem:[#allocation2] sm:$0xff]
        %v819 = vld [vmem:[#allocation2 + $0x8] sm:$0xff]
        %v820 = vld [vmem:[#allocation2 + $0x10] sm:$0xff]
        %v821 = vld [vmem:[#allocation2 + $0x18] sm:$0xff]
        %v822 = vld [vmem:[#allocation2 + $0x20] sm:$0xff]
        %v823 = vld [vmem:[#allocation2 + $0x28] sm:$0xff]
        %v824 = vld [vmem:[#allocation2 + $0x30] sm:$0xff]
        %v825 = vld [vmem:[#allocation2 + $0x38] sm:$0xff]
        %v826 = vld [vmem:[#allocation2 + $0x40] sm:$0xff]
        %v827 = vld [vmem:[#allocation2 + $0x48] sm:$0xff]
        %v828 = vld [vmem:[#allocation2 + $0x50] sm:$0xff]
        %v829 = vld [vmem:[#allocation2 + $0x58] sm:$0xff]
        %v830 = vld [vmem:[#allocation2 + $0x60] sm:$0xff]
        %v831 = vld [vmem:[#allocation2 + $0x68] sm:$0xff]
        %v832 = vld [vmem:[#allocation2 + $0x70] sm:$0xff]
        %v833 = vld [vmem:[#allocation2 + $0x78] sm:$0xff]
        %v834 = vld [vmem:[#allocation2 + $0x80] sm:$0xff]
        %v835 = vld [vmem:[#allocation2 + $0x88] sm:$0xff]
        %v836 = vld [vmem:[#allocation2 + $0x90] sm:$0xff]
        %v837 = vld [vmem:[#allocation2 + $0x98] sm:$0xff]
        %v838 = vld [vmem:[#allocation2 + $0xa0] sm:$0xff]
        %v839 = vld [vmem:[#allocation2 + $0xa8] sm:$0xff]
        %v840 = vld [vmem:[#allocation2 + $0xb0] sm:$0xff]
        %v841 = vld [vmem:[#allocation2 + $0xb8] sm:$0xff]
        %v842 = vld [vmem:[#allocation2 + $0xc0] sm:$0xff]
        %v843 = vld [vmem:[#allocation2 + $0xc8] sm:$0xff]
        %v844 = vld [vmem:[#allocation2 + $0xd0] sm:$0xff]
        %v845 = vld [vmem:[#allocation2 + $0xd8] sm:$0xff]
        %v846 = vld [vmem:[#allocation2 + $0xe0] sm:$0xff]
        %v847 = vld [vmem:[#allocation2 + $0xe8] sm:$0xff]
        %v848 = vld [vmem:[#allocation2 + $0xf0] sm:$0xff]
        %v849 = vld [vmem:[#allocation2 + $0xf8] sm:$0xff]
        %v850 = vadd.f32 %v818, %v692
        %v851 = vadd.f32 %v819, %v695
        %v852 = vadd.f32 %v820, %v700
        %v853 = vadd.f32 %v821, %v703
        %v854 = vadd.f32 %v822, %v708
        %v855 = vadd.f32 %v823, %v711
        %v856 = vadd.f32 %v824, %v716
        %v857 = vadd.f32 %v825, %v719
        %v858 = vadd.f32 %v826, %v724
        %v859 = vadd.f32 %v827, %v727
        %v860 = vadd.f32 %v828, %v732
        %v861 = vadd.f32 %v829, %v735
        %v862 = vadd.f32 %v830, %v740
        %v863 = vadd.f32 %v831, %v743
        %v864 = vadd.f32 %v832, %v748
        %v865 = vadd.f32 %v833, %v751
        %v866 = vadd.f32 %v834, %v756
        %v867 = vadd.f32 %v835, %v759
        %v868 = vadd.f32 %v836, %v764
        %v869 = vadd.f32 %v837, %v767
        %v870 = vadd.f32 %v838, %v772
        %v871 = vadd.f32 %v839, %v775
        %v872 = vadd.f32 %v840, %v780
        %v873 = vadd.f32 %v841, %v783
        %v874 = vadd.f32 %v842, %v788
        %v875 = vadd.f32 %v843, %v791
        %v876 = vadd.f32 %v844, %v796
        %v877 = vadd.f32 %v845, %v799
        %v878 = vadd.f32 %v846, %v804
        %v879 = vadd.f32 %v847, %v807
        %v880 = vadd.f32 %v848, %v812
        %v881 = vadd.f32 %v849, %v815
        %882 = vst [vmem:[#allocation2] sm:$0xff] %v850
        %883 = vst [vmem:[#allocation2 + $0x8] sm:$0xff] %v851
        %884 = vst [vmem:[#allocation2 + $0x10] sm:$0xff] %v852
        %885 = vst [vmem:[#allocation2 + $0x18] sm:$0xff] %v853
        %886 = vst [vmem:[#allocation2 + $0x20] sm:$0xff] %v854
        %887 = vst [vmem:[#allocation2 + $0x28] sm:$0xff] %v855
        %888 = vst [vmem:[#allocation2 + $0x30] sm:$0xff] %v856
        %889 = vst [vmem:[#allocation2 + $0x38] sm:$0xff] %v857
        %890 = vst [vmem:[#allocation2 + $0x40] sm:$0xff] %v858
        %891 = vst [vmem:[#allocation2 + $0x48] sm:$0xff] %v859
        %892 = vst [vmem:[#allocation2 + $0x50] sm:$0xff] %v860
        %893 = vst [vmem:[#allocation2 + $0x58] sm:$0xff] %v861
        %894 = vst [vmem:[#allocation2 + $0x60] sm:$0xff] %v862
        %895 = vst [vmem:[#allocation2 + $0x68] sm:$0xff] %v863
        %896 = vst [vmem:[#allocation2 + $0x70] sm:$0xff] %v864
        %897 = vst [vmem:[#allocation2 + $0x78] sm:$0xff] %v865
        %898 = vst [vmem:[#allocation2 + $0x80] sm:$0xff] %v866
        %899 = vst [vmem:[#allocation2 + $0x88] sm:$0xff] %v867
        %900 = vst [vmem:[#allocation2 + $0x90] sm:$0xff] %v868
        %901 = vst [vmem:[#allocation2 + $0x98] sm:$0xff] %v869
        %902 = vst [vmem:[#allocation2 + $0xa0] sm:$0xff] %v870
        %903 = vst [vmem:[#allocation2 + $0xa8] sm:$0xff] %v871
        %904 = vst [vmem:[#allocation2 + $0xb0] sm:$0xff] %v872
        %905 = vst [vmem:[#allocation2 + $0xb8] sm:$0xff] %v873
        %906 = vst [vmem:[#allocation2 + $0xc0] sm:$0xff] %v874
        %907 = vst [vmem:[#allocation2 + $0xc8] sm:$0xff] %v875
        %908 = vst [vmem:[#allocation2 + $0xd0] sm:$0xff] %v876
        %909 = vst [vmem:[#allocation2 + $0xd8] sm:$0xff] %v877
        %910 = vst [vmem:[#allocation2 + $0xe0] sm:$0xff] %v878
        %911 = vst [vmem:[#allocation2 + $0xe8] sm:$0xff] %v879
        %912 = vst [vmem:[#allocation2 + $0xf0] sm:$0xff] %v880
        %913 = vst [vmem:[#allocation2 + $0xf8] sm:$0xff] %v881
        // Predicated region
        $region49: #{tpu_custom_call.1} parent=35 // pred_check
          %p914 = pneg %p301
        $region50: #{tpu_custom_call.1} parent=35 // pred_check_branch
          %916 = sbr.rel (%p914) target = $region52
        $region51: #{tpu_custom_call.1} parent=35 // pred_region
          %v917 = vld [vmem:[#allocation2] sm:$0xff]
          %v918 = vld [vmem:[#allocation2 + $0x8] sm:$0xff]
          %v919 = vld [vmem:[#allocation2 + $0x10] sm:$0xff]
          %v920 = vld [vmem:[#allocation2 + $0x18] sm:$0xff]
          %v921 = vld [vmem:[#allocation2 + $0x20] sm:$0xff]
          %v922 = vld [vmem:[#allocation2 + $0x28] sm:$0xff]
          %v923 = vld [vmem:[#allocation2 + $0x30] sm:$0xff]
          %v924 = vld [vmem:[#allocation2 + $0x38] sm:$0xff]
          %v925 = vld [vmem:[#allocation2 + $0x40] sm:$0xff]
          %v926 = vld [vmem:[#allocation2 + $0x48] sm:$0xff]
          %v927 = vld [vmem:[#allocation2 + $0x50] sm:$0xff]
          %v928 = vld [vmem:[#allocation2 + $0x58] sm:$0xff]
          %v929 = vld [vmem:[#allocation2 + $0x60] sm:$0xff]
          %v930 = vld [vmem:[#allocation2 + $0x68] sm:$0xff]
          %v931 = vld [vmem:[#allocation2 + $0x70] sm:$0xff]
          %v932 = vld [vmem:[#allocation2 + $0x78] sm:$0xff]
          %v933 = vld [vmem:[#allocation2 + $0x80] sm:$0xff]
          %v934 = vld [vmem:[#allocation2 + $0x88] sm:$0xff]
          %v935 = vld [vmem:[#allocation2 + $0x90] sm:$0xff]
          %v936 = vld [vmem:[#allocation2 + $0x98] sm:$0xff]
          %v937 = vld [vmem:[#allocation2 + $0xa0] sm:$0xff]
          %v938 = vld [vmem:[#allocation2 + $0xa8] sm:$0xff]
          %v939 = vld [vmem:[#allocation2 + $0xb0] sm:$0xff]
          %v940 = vld [vmem:[#allocation2 + $0xb8] sm:$0xff]
          %v941 = vld [vmem:[#allocation2 + $0xc0] sm:$0xff]
          %v942 = vld [vmem:[#allocation2 + $0xc8] sm:$0xff]
          %v943 = vld [vmem:[#allocation2 + $0xd0] sm:$0xff]
          %v944 = vld [vmem:[#allocation2 + $0xd8] sm:$0xff]
          %v945 = vld [vmem:[#allocation2 + $0xe0] sm:$0xff]
          %v946 = vld [vmem:[#allocation2 + $0xe8] sm:$0xff]
          %v947 = vld [vmem:[#allocation2 + $0xf0] sm:$0xff]
          %v948 = vld [vmem:[#allocation2 + $0xf8] sm:$0xff]
          %v949 = vld [vmem:[%s295] sm:$0x1]
          %v951 = vlaneseq
          %v952 = vshrl.u32 %v951, 7
          %v953 = vsub.s32 0, %v952
          %v954 = vrot.slane %v949, %v953
          %v956 = vmul.f32 %v917, %v954
          %v957 = vmul.f32 %v918, %v954
          %v958 = vmul.f32 %v919, %v954
          %v959 = vmul.f32 %v920, %v954
          %v960 = vmul.f32 %v921, %v954
          %v961 = vmul.f32 %v922, %v954
          %v962 = vmul.f32 %v923, %v954
          %v963 = vmul.f32 %v924, %v954
          %v964 = vmul.f32 %v925, %v954
          %v965 = vmul.f32 %v926, %v954
          %v966 = vmul.f32 %v927, %v954
          %v967 = vmul.f32 %v928, %v954
          %v968 = vmul.f32 %v929, %v954
          %v969 = vmul.f32 %v930, %v954
          %v970 = vmul.f32 %v931, %v954
          %v971 = vmul.f32 %v932, %v954
          %v972 = vmul.f32 %v933, %v954
          %v973 = vmul.f32 %v934, %v954
          %v974 = vmul.f32 %v935, %v954
          %v975 = vmul.f32 %v936, %v954
          %v976 = vmul.f32 %v937, %v954
          %v977 = vmul.f32 %v938, %v954
          %v978 = vmul.f32 %v939, %v954
          %v979 = vmul.f32 %v940, %v954
          %v980 = vmul.f32 %v941, %v954
          %v981 = vmul.f32 %v942, %v954
          %v982 = vmul.f32 %v943, %v954
          %v983 = vmul.f32 %v944, %v954
          %v984 = vmul.f32 %v945, %v954
          %v985 = vmul.f32 %v946, %v954
          %v986 = vmul.f32 %v947, %v954
          %v987 = vmul.f32 %v948, %v954
          %v988 = vld [vmem:[%s298] sm:$0x1]
          %v990 = vlaneseq
          %v991 = vshrl.u32 %v990, 7
          %v992 = vsub.s32 0, %v991
          %v993 = vrot.slane %v988, %v992
          %v995 = vadd.f32 %v956, %v993
          %v996 = vadd.f32 %v957, %v993
          %v997 = vadd.f32 %v958, %v993
          %v998 = vadd.f32 %v959, %v993
          %v999 = vadd.f32 %v960, %v993
          %v1000 = vadd.f32 %v961, %v993
          %v1001 = vadd.f32 %v962, %v993
          %v1002 = vadd.f32 %v963, %v993
          %v1003 = vadd.f32 %v964, %v993
          %v1004 = vadd.f32 %v965, %v993
          %v1005 = vadd.f32 %v966, %v993
          %v1006 = vadd.f32 %v967, %v993
          %v1007 = vadd.f32 %v968, %v993
          %v1008 = vadd.f32 %v969, %v993
          %v1009 = vadd.f32 %v970, %v993
          %v1010 = vadd.f32 %v971, %v993
          %v1011 = vadd.f32 %v972, %v993
          %v1012 = vadd.f32 %v973, %v993
          %v1013 = vadd.f32 %v974, %v993
          %v1014 = vadd.f32 %v975, %v993
          %v1015 = vadd.f32 %v976, %v993
          %v1016 = vadd.f32 %v977, %v993
          %v1017 = vadd.f32 %v978, %v993
          %v1018 = vadd.f32 %v979, %v993
          %v1019 = vadd.f32 %v980, %v993
          %v1020 = vadd.f32 %v981, %v993
          %v1021 = vadd.f32 %v982, %v993
          %v1022 = vadd.f32 %v983, %v993
          %v1023 = vadd.f32 %v984, %v993
          %v1024 = vadd.f32 %v985, %v993
          %v1025 = vadd.f32 %v986, %v993
          %v1026 = vadd.f32 %v987, %v993
          %v1027 = vmax.f32 %v995, 0.0
          %v1028 = vmax.f32 %v996, 0.0
          %v1029 = vmax.f32 %v997, 0.0
          %v1030 = vmax.f32 %v998, 0.0
          %v1031 = vmax.f32 %v999, 0.0
          %v1032 = vmax.f32 %v1000, 0.0
          %v1033 = vmax.f32 %v1001, 0.0
          %v1034 = vmax.f32 %v1002, 0.0
          %v1035 = vmax.f32 %v1003, 0.0
          %v1036 = vmax.f32 %v1004, 0.0
          %v1037 = vmax.f32 %v1005, 0.0
          %v1038 = vmax.f32 %v1006, 0.0
          %v1039 = vmax.f32 %v1007, 0.0
          %v1040 = vmax.f32 %v1008, 0.0
          %v1041 = vmax.f32 %v1009, 0.0
          %v1042 = vmax.f32 %v1010, 0.0
          %v1043 = vmax.f32 %v1011, 0.0
          %v1044 = vmax.f32 %v1012, 0.0
          %v1045 = vmax.f32 %v1013, 0.0
          %v1046 = vmax.f32 %v1014, 0.0
          %v1047 = vmax.f32 %v1015, 0.0
          %v1048 = vmax.f32 %v1016, 0.0
          %v1049 = vmax.f32 %v1017, 0.0
          %v1050 = vmax.f32 %v1018, 0.0
          %v1051 = vmax.f32 %v1019, 0.0
          %v1052 = vmax.f32 %v1020, 0.0
          %v1053 = vmax.f32 %v1021, 0.0
          %v1054 = vmax.f32 %v1022, 0.0
          %v1055 = vmax.f32 %v1023, 0.0
          %v1056 = vmax.f32 %v1024, 0.0
          %v1057 = vmax.f32 %v1025, 0.0
          %v1058 = vmax.f32 %v1026, 0.0
          %v1059 = vpack.c.bf16 %v1028, %v1027
          %v1060 = vpack.c.bf16 %v1030, %v1029
          %v1061 = vpack.c.bf16 %v1032, %v1031
          %v1062 = vpack.c.bf16 %v1034, %v1033
          %v1063 = vpack.c.bf16 %v1036, %v1035
          %v1064 = vpack.c.bf16 %v1038, %v1037
          %v1065 = vpack.c.bf16 %v1040, %v1039
          %v1066 = vpack.c.bf16 %v1042, %v1041
          %v1067 = vpack.c.bf16 %v1044, %v1043
          %v1068 = vpack.c.bf16 %v1046, %v1045
          %v1069 = vpack.c.bf16 %v1048, %v1047
          %v1070 = vpack.c.bf16 %v1050, %v1049
          %v1071 = vpack.c.bf16 %v1052, %v1051
          %v1072 = vpack.c.bf16 %v1054, %v1053
          %v1073 = vpack.c.bf16 %v1056, %v1055
          %v1074 = vpack.c.bf16 %v1058, %v1057
          %v1091 = vunpack.c.l.b16 %v1059
          %v1092 = vunpack.c.h.b16 %v1059
          %v1093 = vunpack.c.l.b16 %v1060
          %v1094 = vunpack.c.h.b16 %v1060
          %v1095 = vunpack.c.l.b16 %v1061
          %v1096 = vunpack.c.h.b16 %v1061
          %v1097 = vunpack.c.l.b16 %v1062
          %v1098 = vunpack.c.h.b16 %v1062
          %v1099 = vunpack.c.l.b16 %v1063
          %v1100 = vunpack.c.h.b16 %v1063
          %v1101 = vunpack.c.l.b16 %v1064
          %v1102 = vunpack.c.h.b16 %v1064
          %v1103 = vunpack.c.l.b16 %v1065
          %v1104 = vunpack.c.h.b16 %v1065
          %v1105 = vunpack.c.l.b16 %v1066
          %v1106 = vunpack.c.h.b16 %v1066
          %v1107 = vunpack.c.l.b16 %v1067
          %v1108 = vunpack.c.h.b16 %v1067
          %v1109 = vunpack.c.l.b16 %v1068
          %v1110 = vunpack.c.h.b16 %v1068
          %v1111 = vunpack.c.l.b16 %v1069
          %v1112 = vunpack.c.h.b16 %v1069
          %v1113 = vunpack.c.l.b16 %v1070
          %v1114 = vunpack.c.h.b16 %v1070
          %v1115 = vunpack.c.l.b16 %v1071
          %v1116 = vunpack.c.h.b16 %v1071
          %v1117 = vunpack.c.l.b16 %v1072
          %v1118 = vunpack.c.h.b16 %v1072
          %v1119 = vunpack.c.l.b16 %v1073
          %v1120 = vunpack.c.h.b16 %v1073
          %v1121 = vunpack.c.l.b16 %v1074
          %v1122 = vunpack.c.h.b16 %v1074
          %v1123 = vpack.c.b16 %v1091, %v1091
          %v1124 = vpack.c.b16 %v1092, %v1092
          %v1125 = vpack.c.b16 %v1093, %v1093
          %v1126 = vpack.c.b16 %v1094, %v1094
          %v1127 = vpack.c.b16 %v1095, %v1095
          %v1128 = vpack.c.b16 %v1096, %v1096
          %v1129 = vpack.c.b16 %v1097, %v1097
          %v1130 = vpack.c.b16 %v1098, %v1098
          %v1131 = vpack.c.b16 %v1099, %v1099
          %v1132 = vpack.c.b16 %v1100, %v1100
          %v1133 = vpack.c.b16 %v1101, %v1101
          %v1134 = vpack.c.b16 %v1102, %v1102
          %v1135 = vpack.c.b16 %v1103, %v1103
          %v1136 = vpack.c.b16 %v1104, %v1104
          %v1137 = vpack.c.b16 %v1105, %v1105
          %v1138 = vpack.c.b16 %v1106, %v1106
          %v1139 = vpack.c.b16 %v1107, %v1107
          %v1140 = vpack.c.b16 %v1108, %v1108
          %v1141 = vpack.c.b16 %v1109, %v1109
          %v1142 = vpack.c.b16 %v1110, %v1110
          %v1143 = vpack.c.b16 %v1111, %v1111
          %v1144 = vpack.c.b16 %v1112, %v1112
          %v1145 = vpack.c.b16 %v1113, %v1113
          %v1146 = vpack.c.b16 %v1114, %v1114
          %v1147 = vpack.c.b16 %v1115, %v1115
          %v1148 = vpack.c.b16 %v1116, %v1116
          %v1149 = vpack.c.b16 %v1117, %v1117
          %v1150 = vpack.c.b16 %v1118, %v1118
          %v1151 = vpack.c.b16 %v1119, %v1119
          %v1152 = vpack.c.b16 %v1120, %v1120
          %v1153 = vpack.c.b16 %v1121, %v1121
          %v1154 = vpack.c.b16 %v1122, %v1122
          %1187 = vst [vmem:[%s289] sm:$0xf] %v1123
          %1188 = vst [vmem:[%s289 + $0x4] sm:$0xf] %v1124
          %1189 = vst [vmem:[%s289 + $0x8] sm:$0xf] %v1125
          %1190 = vst [vmem:[%s289 + $0xc] sm:$0xf] %v1126
          %1191 = vst [vmem:[%s289 + $0x10] sm:$0xf] %v1127
          %1192 = vst [vmem:[%s289 + $0x14] sm:$0xf] %v1128
          %1193 = vst [vmem:[%s289 + $0x18] sm:$0xf] %v1129
          %1194 = vst [vmem:[%s289 + $0x1c] sm:$0xf] %v1130
          %1195 = vst [vmem:[%s289 + $0x20] sm:$0xf] %v1131
          %1196 = vst [vmem:[%s289 + $0x24] sm:$0xf] %v1132
          %1197 = vst [vmem:[%s289 + $0x28] sm:$0xf] %v1133
          %1198 = vst [vmem:[%s289 + $0x2c] sm:$0xf] %v1134
          %1199 = vst [vmem:[%s289 + $0x30] sm:$0xf] %v1135
          %1200 = vst [vmem:[%s289 + $0x34] sm:$0xf] %v1136
          %1201 = vst [vmem:[%s289 + $0x38] sm:$0xf] %v1137
          %1202 = vst [vmem:[%s289 + $0x3c] sm:$0xf] %v1138
          %1203 = vst [vmem:[%s289 + $0x40] sm:$0xf] %v1139
          %1204 = vst [vmem:[%s289 + $0x44] sm:$0xf] %v1140
          %1205 = vst [vmem:[%s289 + $0x48] sm:$0xf] %v1141
          %1206 = vst [vmem:[%s289 + $0x4c] sm:$0xf] %v1142
          %1207 = vst [vmem:[%s289 + $0x50] sm:$0xf] %v1143
          %1208 = vst [vmem:[%s289 + $0x54] sm:$0xf] %v1144
          %1209 = vst [vmem:[%s289 + $0x58] sm:$0xf] %v1145
          %1210 = vst [vmem:[%s289 + $0x5c] sm:$0xf] %v1146
          %1211 = vst [vmem:[%s289 + $0x60] sm:$0xf] %v1147
          %1212 = vst [vmem:[%s289 + $0x64] sm:$0xf] %v1148
          %1213 = vst [vmem:[%s289 + $0x68] sm:$0xf] %v1149
          %1214 = vst [vmem:[%s289 + $0x6c] sm:$0xf] %v1150
          %1215 = vst [vmem:[%s289 + $0x70] sm:$0xf] %v1151
          %1216 = vst [vmem:[%s289 + $0x74] sm:$0xf] %v1152
          %1217 = vst [vmem:[%s289 + $0x78] sm:$0xf] %v1153
          %1218 = vst [vmem:[%s289 + $0x7c] sm:$0xf] %v1154
        $region52: #{tpu_custom_call.1} parent=35 // pred_fallthru
          _
        %s1219 = sand.u32 %s159, 1
        %s1220 = scalar_lea.sflag [#allocation5], %s1219
        %s1221 = sand.u32 %s159, 1
        %s1222 = smul.addr %s1221, 128
        %s1223 = scalar_lea.vmem [#allocation8], %s1222
        // Predicated region
        $region53: #{tpu_custom_call.1} parent=35 // pred_check
          %p1224 = pneg %p169
        $region54: #{tpu_custom_call.1} parent=35 // pred_check_branch
          %1226 = sbr.rel (%p1224) target = $region56
        $region55: #{tpu_custom_call.1} parent=35 // pred_region
          %s1227 = smul.u32 32, %s27
          %s1229 = ssub.s32 2048, 2048
          %1230 = vsyncadd %s1220, %s1229
          %s1231 = sadd.s32 %s28, %s1227
          %s1232 = smul.addr %s1231, 64
          %s1233 = scalar_lea.hbm %s4, %s1232
          %s1234 = sshll.u32 %s1223, 4
          %s1235 = int_to_ptr.vmem [resolvable:$true] %s1234
          %1240 = dma.vmem_to_hbm [thread:$0]  %s1235, 2048, %s1233, %s1220, 64, 64, 4
        $region56: #{tpu_custom_call.1} parent=35 // pred_fallthru
          _
      $region36: #{tpu_custom_call.1} parent=5 // pred_fallthru
        _
      %p1241 = scmp.le.s32.totalorder 2, %s17
      // Predicated region
      $region57: #{tpu_custom_call.1} parent=5 // pred_check
        %p1242 = pneg %p1241
      $region58: #{tpu_custom_call.1} parent=5 // pred_check_branch
        %1244 = sbr.rel (%p1242) target = $region60
      $region59: #{tpu_custom_call.1} parent=5 // pred_region
        %s1245 = ssub.s32 %s17, 2
        // Predicated region
        $region61: #{tpu_custom_call.1} parent=59 // pred_check
          %p1246 = pneg %p175
        $region62: #{tpu_custom_call.1} parent=59 // pred_check_branch
          %1248 = sbr.rel (%p1246) target = $region64
        $region63: #{tpu_custom_call.1} parent=59 // pred_region
          %s1249 = sand.u32 %s160, 1
          %s1250 = scalar_lea.sflag [#allocation5], %s1249
          %s1251 = sand.u32 %s160, 1
          %s1252 = smul.addr %s1251, 128
          %s1253 = scalar_lea.vmem [#allocation8], %s1252
          %1254 = dma.done %s1250, 2048
        $region64: #{tpu_custom_call.1} parent=59 // pred_fallthru
          _
      $region60: #{tpu_custom_call.1} parent=5 // pred_fallthru
        _
    $region6: #{tpu_custom_call.1} parent=1 // loop_footer
      %s21 = sadd.s32 1, %s17
    $region7: #{tpu_custom_call.1} parent=1 // loop_footer_branch
      %16 = sbr.rel target = $region3
    $region8: #{tpu_custom_call.1} parent=1 // loop_exit
      _
    %1255 = vsyncpa [#allocation4], 1
    %s1256 = scalar_lea.sflag [#allocation4], 1
    %1257 = vsyncpa %s1256, 1
    %1258 = vsyncpa [#allocation7], 1
    %1259 = vsyncpa [#allocation5], 1
    %s1260 = scalar_lea.sflag [#allocation5], 1
    %1261 = vsyncpa %s1260, 1

</llo_original>
